<compile_context>
chip_gen: v5e
topology: v5e:2x2
jax: 0.10.0
libtpu: 0.0.40
codegen_flags: <defaults>
</compile_context>

<pallas_src>
import functools

import jax
import jax.numpy as jnp
import numpy as np
from jax.experimental import pallas as pl
from jax.experimental.pallas import tpu as pltpu

_BN_EPS = 1e-5
_INV_SQRT2 = 0.7071067811865476


def _round_up(v, m):
    return (v + m - 1) // m * m


def _erf_f32(x):
    # Abramowitz & Stegun 7.1.26, |err| <= 1.5e-7.  The divide goes to the EUP
    # via an approximate reciprocal (VALU stays free for the polynomial).
    p = 0.3275911
    a1, a2, a3, a4, a5 = (0.254829592, -0.284496736, 1.421413741,
                          -1.453152027, 1.061405429)
    sign = jnp.where(x >= 0.0, 1.0, -1.0)
    ax = jnp.abs(x)
    t = pl.reciprocal(1.0 + p * ax, approx=True)
    poly = ((((a5 * t + a4) * t + a3) * t + a2) * t + a1) * t
    return sign * (1.0 - poly * jnp.exp(-ax * ax))


# out[c, r] = sum_k lhs[c, k] * rhs[r, k]   (A @ B^T, q@k.T-style matmul)
_DN_ABT = (((1,), (1,)), ((), ()))


def _conv_ct(x_ref, w_ref, *, mt_pad, wp):
    """3x3 conv for one image, channels-on-sublanes result.

    x_ref: (L3, 3*Cin_p) bf16 flattened padded rows, kw folded into channels.
    w_ref: (3, Cout_p, 3*Cin_p) bf16, one (Cout_p, 3*Cin_p) slab per dy.
    Returns (Cout_p, mt_pad) f32; lane r = flat padded-row index y*wp + xcol.
    """
    acc = None
    for dy in range(3):                                   # 3 MXU matmuls, K=3*Cin_p
        piece = x_ref[dy * wp: dy * wp + mt_pad, :]       # bf16, no upcast
        part = jax.lax.dot_general(w_ref[dy], piece, _DN_ABT,
                                   preferred_element_type=jnp.float32)
        acc = part if acc is None else acc + part
    return acc


def _stats_kernel(x_ref, w_ref, stats_ref, *, mt, mt_pad, wp, wo):
    """Pass 1: conv + per-channel sum / sum-of-squares accumulation."""
    @pl.when(pl.program_id(0) == 0)
    def _():
        stats_ref[...] = jnp.zeros_like(stats_ref)

    y = _conv_ct(x_ref, w_ref, mt_pad=mt_pad, wp=wp)      # (Cout_p, mt_pad) f32
    col = jax.lax.broadcasted_iota(jnp.int32, (1, mt_pad), 1)
    valid = ((col % wp < wo) & (col < mt)).astype(jnp.float32)  # mask garbage cols
    ym = y * valid
    stats_ref[:, 0:1] += jnp.sum(ym, axis=1, keepdims=True)        # sum
    stats_ref[:, 1:2] += jnp.sum(ym * y, axis=1, keepdims=True)    # sum of sq


def _norm_gelu_kernel(x_ref, w_ref, scale_ref, shift_ref, o_ref, *, mt_pad, wp):
    """Pass 2: conv (recomputed) + BN affine + exact GELU, compact bf16 store."""
    y = _conv_ct(x_ref, w_ref, mt_pad=mt_pad, wp=wp)      # (Cout_p, mt_pad) f32
    z = y * scale_ref[...] + shift_ref[...]               # (Cout_p, 1) lane-bcast
    g = 0.5 * z * (1.0 + _erf_f32(z * _INV_SQRT2))
    o_ref[...] = g.astype(o_ref.dtype)


def cbr_forward(x_nchw, weight, bias, gamma, beta, *, padding=1):
    # `bias` is intentionally unused: training-mode BatchNorm's mean
    # subtraction cancels a per-channel conv bias exactly.
    del bias
    n, cin, h, w = x_nchw.shape
    cout, cin_w, kh, kw = weight.shape
    assert (cin_w, kh, kw, padding) == (cin, 3, 3, 1), "supports 3x3 / s1 / p1"

    ho, wo = h, w
    wp = _round_up(w + 2, 2)          # padded row stride (even -> aligned dy*wp)
    mt = ho * wp                      # conv rows per image (incl. garbage cols)
    mt_pad = _round_up(mt, 8)
    l3 = mt_pad + 2 * wp              # rows of dx-expanded input read in-kernel
    hp = -(-(l3 + 2) // wp)           # padded image rows (>= ho + 3)
    cin_p = _round_up(cin, 16)        # bf16 sublane packing
    cout_p = _round_up(cout, 8)

    # ---- glue: NCHW -> flattened padded rows, kw (dx) folded into channels ----
    x_nhwc = jnp.transpose(x_nchw, (0, 2, 3, 1)).astype(jnp.float32)
    xpad = jnp.pad(x_nhwc, ((0, 0), (1, hp - 1 - ho), (1, wp - 1 - wo),
                            (0, cin_p - cin)))
    xf = xpad.reshape(n, hp * wp, cin_p)
    x3 = jnp.concatenate([xf[:, d:l3 + d, :] for d in range(3)],
                         axis=-1).astype(jnp.bfloat16)          # (n, l3, 3*cin_p)

    # weight (Cout,Cin,3,3) -> (3, Cout_p, 3*Cin_p): w3[dy, co, dx*cin_p + c]
    w3 = jnp.transpose(weight, (2, 0, 3, 1)).astype(jnp.float32)  # (dy,co,dx,c)
    w3 = jnp.pad(w3, ((0, 0), (0, cout_p - cout), (0, 0), (0, cin_p - cin)))
    w3 = w3.reshape(3, cout_p, 3 * cin_p).astype(jnp.bfloat16)

    x_spec = pl.BlockSpec((None, l3, 3 * cin_p), lambda i: (i, 0, 0))
    w_spec = pl.BlockSpec((3, cout_p, 3 * cin_p), lambda i: (0, 0, 0))

    # ---- pass 1: per-channel sum / sum-of-squares over the whole batch ----
    stats = pl.pallas_call(
        functools.partial(_stats_kernel, mt=mt, mt_pad=mt_pad, wp=wp, wo=wo),
        out_shape=jax.ShapeDtypeStruct((cout_p, 2), jnp.float32),
        grid=(n,),
        in_specs=[x_spec, w_spec],
        out_specs=pl.BlockSpec((cout_p, 2), lambda i: (0, 0)),
        compiler_params=pltpu.CompilerParams(
            dimension_semantics=("arbitrary",)),    # resident accumulator
    )(x3, w3)

    m = float(n * ho * wo)
    mean = stats[:, 0] / m
    var = jnp.maximum(stats[:, 1] / m - mean * mean, 0.0)   # biased variance
    gamma_p = jnp.pad(gamma.astype(jnp.float32), (0, cout_p - cout))
    beta_p = jnp.pad(beta.astype(jnp.float32), (0, cout_p - cout))
    scale_v = gamma_p * jax.lax.rsqrt(var + _BN_EPS)
    shift_v = beta_p - mean * scale_v
    scale = scale_v.reshape(cout_p, 1)
    shift = shift_v.reshape(cout_p, 1)

    # ---- pass 2: conv recompute + BN affine + exact GELU, compact bf16 out ----
    y = pl.pallas_call(
        functools.partial(_norm_gelu_kernel, mt_pad=mt_pad, wp=wp),
        out_shape=jax.ShapeDtypeStruct((n, cout_p, mt_pad), jnp.bfloat16),
        grid=(n,),
        in_specs=[x_spec, w_spec,
                  pl.BlockSpec((cout_p, 1), lambda i: (0, 0)),
                  pl.BlockSpec((cout_p, 1), lambda i: (0, 0))],
        out_specs=pl.BlockSpec((None, cout_p, mt_pad), lambda i: (i, 0, 0)),
        compiler_params=pltpu.CompilerParams(
            dimension_semantics=("parallel",)),     # independent per image
    )(x3, w3, scale, shift)

    # drop padded rows / channels / garbage width columns -> NCHW
    y = y[:, :cout, :mt].reshape(n, cout, ho, wp)[:, :, :, :wo]
    return y.astype(jnp.float32)


def cbr_reference(x_nchw, weight, bias, gamma, beta):
    # pure-JAX reference (XLA) for validation
    y = jax.lax.conv_general_dilated(
        x_nchw.astype(jnp.float32), weight.astype(jnp.float32),
        window_strides=(1, 1), padding=((1, 1), (1, 1)),
        dimension_numbers=("NCHW", "OIHW", "NCHW"))
    y = y + bias[None, :, None, None]
    mean = jnp.mean(y, axis=(0, 2, 3), keepdims=True)
    var = jnp.mean((y - mean) ** 2, axis=(0, 2, 3), keepdims=True)
    z = (y - mean) / jnp.sqrt(var + _BN_EPS)
    z = z * gamma[None, :, None, None] + beta[None, :, None, None]
    return jax.nn.gelu(z, approximate=False)


if __name__ == "__main__":
    N, Cin, Cout, H, W = 2, 4, 8, 16, 16
    key = jax.random.PRNGKey(0)
    kx, kw_, kb = jax.random.split(key, 3)

    x = jax.random.normal(kx, (N, Cin, H, W), dtype=jnp.float32)

    # deterministic parameter init (mimics PyTorch defaults):
    fan_in = Cin * 3 * 3
    bound = 1.0 / float(np.sqrt(fan_in))
    weight = jax.random.uniform(kw_, (Cout, Cin, 3, 3), jnp.float32, -bound, bound)
    bias = jax.random.uniform(kb, (Cout,), jnp.float32, -bound, bound)
    gamma = jnp.ones((Cout,), jnp.float32)    # nn.BatchNorm2d default weight
    beta = jnp.zeros((Cout,), jnp.float32)    # nn.BatchNorm2d default bias

    fwd = jax.jit(cbr_forward)
    out = jax.block_until_ready(fwd(x, weight, bias, gamma, beta))
    ref = jax.block_until_ready(cbr_reference(x, weight, bias, gamma, beta))

    assert out.shape == (N, Cout, H, W)
    # bf16 MXU inputs, bf16 output store, and the approximate EUP reciprocal in
    # the GELU bound accuracy to roughly bf16 level -> bf16-appropriate tolerance.
    np.testing.assert_allclose(np.asarray(out), np.asarray(ref),
                               atol=2e-2, rtol=2e-2)
    print("KERNEL_OK")
</pallas_src>

<mosaic_0001>
module attributes {stable_mosaic.version = 11 : i64} {
  func.func @_stats_kernel(%arg0: i32, %arg1: memref<1x324x48xbf16, #tpu.memory_space<vmem>>, %arg2: memref<3x8x48xbf16, #tpu.memory_space<vmem>>, %arg3: memref<8x2xf32, #tpu.memory_space<vmem>>) attributes {dimension_semantics = [#tpu.dimension_semantics<arbitrary>], iteration_bounds = array<i64: 2>, scalar_prefetch = 0 : i64, scratch_operands = 0 : i64, tpu.core_type = #tpu.core_type<tc>, window_params = [{transform_indices = @transform_0, window_bounds = array<i64: 1, 324, 48>}, {pipeline_mode = #tpu.pipeline_mode<synchronous>, transform_indices = @transform_1, window_bounds = array<i64: 3, 8, 48>}, {pipeline_mode = #tpu.pipeline_mode<synchronous>, transform_indices = @transform_2, window_bounds = array<i64: 8, 2>}]} {
    %c0_i32 = arith.constant 0 : i32
    %0 = arith.cmpi eq, %arg0, %c0_i32 : i32
    %1 = arith.extui %0 : i1 to i32
    %c0_i32_0 = arith.constant 0 : i32
    %2 = arith.cmpi ne, %1, %c0_i32_0 : i32
    scf.if %2 {
      %cst_30 = arith.constant 0.000000e+00 : f32
      %57 = vector.broadcast %cst_30 : f32 to vector<8x2xf32>
      %c0_31 = arith.constant 0 : index
      %c0_32 = arith.constant 0 : index
      %58 = vector.load %arg3[%c0_31, %c0_32] : memref<8x2xf32, #tpu.memory_space<vmem>>, vector<8x2xf32>
      tpu.vector_store %arg3[%c0_31, %c0_32], %57 {strides = array<i32>} : memref<8x2xf32, #tpu.memory_space<vmem>>, vector<8x2xf32>,
    } else {
    }
    %c0 = arith.constant 0 : index
    %c0_1 = arith.constant 0 : index
    %c0_2 = arith.constant 0 : index
    %3 = vector.load %arg1[%c0, %c0_1, %c0_2] : memref<1x324x48xbf16, #tpu.memory_space<vmem>>, vector<1x288x48xbf16>
    %4 = vector.shape_cast %3 : vector<1x288x48xbf16> to vector<288x48xbf16>
    %c0_3 = arith.constant 0 : index
    %c0_4 = arith.constant 0 : index
    %c0_5 = arith.constant 0 : index
    %5 = vector.load %arg2[%c0_3, %c0_4, %c0_5] : memref<3x8x48xbf16, #tpu.memory_space<vmem>>, vector<1x8x48xbf16>
    %6 = vector.shape_cast %5 : vector<1x8x48xbf16> to vector<8x48xbf16>
    %cst = arith.constant dense<0.000000e+00> : vector<8x288xf32>
    %7 = tpu.matmul %6, %4, %cst {dimension_numbers = #tpu.dot_dimension_numbers<[1], [1], [0], [0], [0, 0, 1, 0], [], []>} : vector<8x48xbf16>, vector<288x48xbf16>, vector<8x288xf32> -> vector<8x288xf32>
    %c0_6 = arith.constant 0 : index
    %c18 = arith.constant 18 : index
    %c0_7 = arith.constant 0 : index
    %8 = vector.load %arg1[%c0_6, %c18, %c0_7] : memref<1x324x48xbf16, #tpu.memory_space<vmem>>, vector<1x288x48xbf16>
    %9 = vector.shape_cast %8 : vector<1x288x48xbf16> to vector<288x48xbf16>
    %c1 = arith.constant 1 : index
    %c0_8 = arith.constant 0 : index
    %c0_9 = arith.constant 0 : index
    %10 = vector.load %arg2[%c1, %c0_8, %c0_9] : memref<3x8x48xbf16, #tpu.memory_space<vmem>>, vector<1x8x48xbf16>
    %11 = vector.shape_cast %10 : vector<1x8x48xbf16> to vector<8x48xbf16>
    %cst_10 = arith.constant dense<0.000000e+00> : vector<8x288xf32>
    %12 = tpu.matmul %11, %9, %cst_10 {dimension_numbers = #tpu.dot_dimension_numbers<[1], [1], [0], [0], [0, 0, 1, 0], [], []>} : vector<8x48xbf16>, vector<288x48xbf16>, vector<8x288xf32> -> vector<8x288xf32>
    %13 = arith.addf %7, %12 : vector<8x288xf32>
    %c0_11 = arith.constant 0 : index
    %c36 = arith.constant 36 : index
    %c0_12 = arith.constant 0 : index
    %14 = vector.load %arg1[%c0_11, %c36, %c0_12] : memref<1x324x48xbf16, #tpu.memory_space<vmem>>, vector<1x288x48xbf16>
    %15 = vector.shape_cast %14 : vector<1x288x48xbf16> to vector<288x48xbf16>
    %c2 = arith.constant 2 : index
    %c0_13 = arith.constant 0 : index
    %c0_14 = arith.constant 0 : index
    %16 = vector.load %arg2[%c2, %c0_13, %c0_14] : memref<3x8x48xbf16, #tpu.memory_space<vmem>>, vector<1x8x48xbf16>
    %17 = vector.shape_cast %16 : vector<1x8x48xbf16> to vector<8x48xbf16>
    %cst_15 = arith.constant dense<0.000000e+00> : vector<8x288xf32>
    %18 = tpu.matmul %17, %15, %cst_15 {dimension_numbers = #tpu.dot_dimension_numbers<[1], [1], [0], [0], [0, 0, 1, 0], [], []>} : vector<8x48xbf16>, vector<288x48xbf16>, vector<8x288xf32> -> vector<8x288xf32>
    %19 = arith.addf %13, %18 : vector<8x288xf32>
    %20 = tpu.iota {dimensions = array<i32: 1>} : vector<1x288xi32>
    %c18_i32 = arith.constant 18 : i32
    %c0_i32_16 = arith.constant 0 : i32
    %21 = arith.cmpi eq, %c18_i32, %c0_i32_16 : i32
    %c1_i32 = arith.constant 1 : i32
    %22 = arith.select %21, %c1_i32, %c18_i32 : i32
    %23 = vector.broadcast %22 : i32 to vector<1x288xi32>
    %24 = arith.remsi %20, %23 : vector<1x288xi32>
    %c0_i32_17 = arith.constant 0 : i32
    %25 = vector.broadcast %c0_i32_17 : i32 to vector<1x288xi32>
    %26 = arith.cmpi ne, %24, %25 : vector<1x288xi32>
    %c0_i32_18 = arith.constant 0 : i32
    %27 = vector.broadcast %c0_i32_18 : i32 to vector<1x288xi32>
    %28 = arith.cmpi slt, %24, %27 : vector<1x288xi32>
    %c0_i32_19 = arith.constant 0 : i32
    %29 = arith.cmpi slt, %22, %c0_i32_19 : i32
    %30 = vector.broadcast %29 : i1 to vector<1x288xi1>
    %31 = vector.broadcast %30 : vector<1x288xi1> to vector<1x288xi1>
    %32 = arith.xori %28, %31 : vector<1x288xi1>
    %33 = arith.andi %32, %26 : vector<1x288xi1>
    %34 = vector.broadcast %22 : i32 to vector<1x288xi32>
    %35 = arith.addi %24, %34 : vector<1x288xi32>
    %36 = arith.select %33, %35, %24 : vector<1x288xi1>, vector<1x288xi32>
    %c16_i32 = arith.constant 16 : i32
    %37 = vector.broadcast %c16_i32 : i32 to vector<1x288xi32>
    %38 = arith.cmpi slt, %36, %37 : vector<1x288xi32>
    %c288_i32 = arith.constant 288 : i32
    %39 = vector.broadcast %c288_i32 : i32 to vector<1x288xi32>
    %40 = arith.cmpi slt, %20, %39 : vector<1x288xi32>
    %41 = arith.andi %38, %40 : vector<1x288xi1>
    %42 = arith.extui %41 : vector<1x288xi1> to vector<1x288xi32>
    %43 = arith.sitofp %42 : vector<1x288xi32> to vector<1x288xf32>
    %44 = vector.broadcast %43 : vector<1x288xf32> to vector<8x288xf32>
    %45 = arith.mulf %19, %44 : vector<8x288xf32>
    %c0_20 = arith.constant 0 : index
    %c0_21 = arith.constant 0 : index
    %46 = vector.load %arg3[%c0_20, %c0_21] : memref<8x2xf32, #tpu.memory_space<vmem>>, vector<8x1xf32>
    %cst_22 = arith.constant dense<0.000000e+00> : vector<8xf32>
    %47 = vector.multi_reduction <add>, %45, %cst_22 [1] : vector<8x288xf32> to vector<8xf32>
    %48 = vector.shape_cast %47 : vector<8xf32> to vector<8x1xf32>
    %49 = arith.addf %46, %48 : vector<8x1xf32>
    %c0_23 = arith.constant 0 : index
    %c0_24 = arith.constant 0 : index
    %50 = vector.load %arg3[%c0_23, %c0_24] : memref<8x2xf32, #tpu.memory_space<vmem>>, vector<8x1xf32>
    tpu.vector_store %arg3[%c0_23, %c0_24], %49 {strides = array<i32>} : memref<8x2xf32, #tpu.memory_space<vmem>>, vector<8x1xf32>,
    %c0_25 = arith.constant 0 : index
    %c1_26 = arith.constant 1 : index
    %51 = vector.load %arg3[%c0_25, %c1_26] : memref<8x2xf32, #tpu.memory_space<vmem>>, vector<8x1xf32>
    %52 = arith.mulf %45, %19 : vector<8x288xf32>
    %cst_27 = arith.constant dense<0.000000e+00> : vector<8xf32>
    %53 = vector.multi_reduction <add>, %52, %cst_27 [1] : vector<8x288xf32> to vector<8xf32>
    %54 = vector.shape_cast %53 : vector<8xf32> to vector<8x1xf32>
    %55 = arith.addf %51, %54 : vector<8x1xf32>
    %c0_28 = arith.constant 0 : index
    %c1_29 = arith.constant 1 : index
    %56 = vector.load %arg3[%c0_28, %c1_29] : memref<8x2xf32, #tpu.memory_space<vmem>>, vector<8x1xf32>
    tpu.vector_store %arg3[%c0_28, %c1_29], %55 {strides = array<i32>} : memref<8x2xf32, #tpu.memory_space<vmem>>, vector<8x1xf32>,
    return
  }
  func.func @transform_0(%arg0: i32) -> (i32, i32, i32) {
    %c0_i32 = arith.constant 0 : i32
    %c0_i32_0 = arith.constant 0 : i32
    %c0_i32_1 = arith.constant 0 : i32
    return %arg0, %c0_i32, %c0_i32_0 : i32, i32, i32
  }
  func.func @transform_1(%arg0: i32) -> (i32, i32, i32) {
    %c0_i32 = arith.constant 0 : i32
    %c0_i32_0 = arith.constant 0 : i32
    %c0_i32_1 = arith.constant 0 : i32
    %c0_i32_2 = arith.constant 0 : i32
    return %c0_i32, %c0_i32_0, %c0_i32_1 : i32, i32, i32
  }
  func.func @transform_2(%arg0: i32) -> (i32, i32) {
    %c0_i32 = arith.constant 0 : i32
    %c0_i32_0 = arith.constant 0 : i32
    %c0_i32_1 = arith.constant 0 : i32
    return %c0_i32, %c0_i32_0 : i32, i32
  }
}

module attributes {stable_mosaic.version = 11 : i64} {
  func.func @_norm_gelu_kernel(%arg0: i32, %arg1: memref<1x324x48xbf16, #tpu.memory_space<vmem>>, %arg2: memref<3x8x48xbf16, #tpu.memory_space<vmem>>, %arg3: memref<8x1xf32, #tpu.memory_space<vmem>>, %arg4: memref<8x1xf32, #tpu.memory_space<vmem>>, %arg5: memref<1x8x288xbf16, #tpu.memory_space<vmem>>) attributes {dimension_semantics = [#tpu.dimension_semantics<parallel>], iteration_bounds = array<i64: 2>, scalar_prefetch = 0 : i64, scratch_operands = 0 : i64, tpu.core_type = #tpu.core_type<tc>, window_params = [{transform_indices = @transform_0, window_bounds = array<i64: 1, 324, 48>}, {pipeline_mode = #tpu.pipeline_mode<synchronous>, transform_indices = @transform_1, window_bounds = array<i64: 3, 8, 48>}, {pipeline_mode = #tpu.pipeline_mode<synchronous>, transform_indices = @transform_2, window_bounds = array<i64: 8, 1>}, {pipeline_mode = #tpu.pipeline_mode<synchronous>, transform_indices = @transform_3, window_bounds = array<i64: 8, 1>}, {transform_indices = @transform_4, window_bounds = array<i64: 1, 8, 288>}]} {
    %c0 = arith.constant 0 : index
    %c0_0 = arith.constant 0 : index
    %c0_1 = arith.constant 0 : index
    %0 = vector.load %arg1[%c0, %c0_0, %c0_1] : memref<1x324x48xbf16, #tpu.memory_space<vmem>>, vector<1x288x48xbf16>
    %1 = vector.shape_cast %0 : vector<1x288x48xbf16> to vector<288x48xbf16>
    %c0_2 = arith.constant 0 : index
    %c0_3 = arith.constant 0 : index
    %c0_4 = arith.constant 0 : index
    %2 = vector.load %arg2[%c0_2, %c0_3, %c0_4] : memref<3x8x48xbf16, #tpu.memory_space<vmem>>, vector<1x8x48xbf16>
    %3 = vector.shape_cast %2 : vector<1x8x48xbf16> to vector<8x48xbf16>
    %cst = arith.constant dense<0.000000e+00> : vector<8x288xf32>
    %4 = tpu.matmul %3, %1, %cst {dimension_numbers = #tpu.dot_dimension_numbers<[1], [1], [0], [0], [0, 0, 1, 0], [], []>} : vector<8x48xbf16>, vector<288x48xbf16>, vector<8x288xf32> -> vector<8x288xf32>
    %c0_5 = arith.constant 0 : index
    %c18 = arith.constant 18 : index
    %c0_6 = arith.constant 0 : index
    %5 = vector.load %arg1[%c0_5, %c18, %c0_6] : memref<1x324x48xbf16, #tpu.memory_space<vmem>>, vector<1x288x48xbf16>
    %6 = vector.shape_cast %5 : vector<1x288x48xbf16> to vector<288x48xbf16>
    %c1 = arith.constant 1 : index
    %c0_7 = arith.constant 0 : index
    %c0_8 = arith.constant 0 : index
    %7 = vector.load %arg2[%c1, %c0_7, %c0_8] : memref<3x8x48xbf16, #tpu.memory_space<vmem>>, vector<1x8x48xbf16>
    %8 = vector.shape_cast %7 : vector<1x8x48xbf16> to vector<8x48xbf16>
    %cst_9 = arith.constant dense<0.000000e+00> : vector<8x288xf32>
    %9 = tpu.matmul %8, %6, %cst_9 {dimension_numbers = #tpu.dot_dimension_numbers<[1], [1], [0], [0], [0, 0, 1, 0], [], []>} : vector<8x48xbf16>, vector<288x48xbf16>, vector<8x288xf32> -> vector<8x288xf32>
    %10 = arith.addf %4, %9 : vector<8x288xf32>
    %c0_10 = arith.constant 0 : index
    %c36 = arith.constant 36 : index
    %c0_11 = arith.constant 0 : index
    %11 = vector.load %arg1[%c0_10, %c36, %c0_11] : memref<1x324x48xbf16, #tpu.memory_space<vmem>>, vector<1x288x48xbf16>
    %12 = vector.shape_cast %11 : vector<1x288x48xbf16> to vector<288x48xbf16>
    %c2 = arith.constant 2 : index
    %c0_12 = arith.constant 0 : index
    %c0_13 = arith.constant 0 : index
    %13 = vector.load %arg2[%c2, %c0_12, %c0_13] : memref<3x8x48xbf16, #tpu.memory_space<vmem>>, vector<1x8x48xbf16>
    %14 = vector.shape_cast %13 : vector<1x8x48xbf16> to vector<8x48xbf16>
    %cst_14 = arith.constant dense<0.000000e+00> : vector<8x288xf32>
    %15 = tpu.matmul %14, %12, %cst_14 {dimension_numbers = #tpu.dot_dimension_numbers<[1], [1], [0], [0], [0, 0, 1, 0], [], []>} : vector<8x48xbf16>, vector<288x48xbf16>, vector<8x288xf32> -> vector<8x288xf32>
    %16 = arith.addf %10, %15 : vector<8x288xf32>
    %c0_15 = arith.constant 0 : index
    %c0_16 = arith.constant 0 : index
    %17 = vector.load %arg3[%c0_15, %c0_16] : memref<8x1xf32, #tpu.memory_space<vmem>>, vector<8x1xf32>
    %18 = vector.broadcast %17 : vector<8x1xf32> to vector<8x288xf32>
    %19 = arith.mulf %16, %18 : vector<8x288xf32>
    %c0_17 = arith.constant 0 : index
    %c0_18 = arith.constant 0 : index
    %20 = vector.load %arg4[%c0_17, %c0_18] : memref<8x1xf32, #tpu.memory_space<vmem>>, vector<8x1xf32>
    %21 = vector.broadcast %20 : vector<8x1xf32> to vector<8x288xf32>
    %22 = arith.addf %19, %21 : vector<8x288xf32>
    %cst_19 = arith.constant 5.000000e-01 : f32
    %23 = vector.broadcast %cst_19 : f32 to vector<8x288xf32>
    %24 = arith.mulf %23, %22 : vector<8x288xf32>
    %cst_20 = arith.constant 0.707106769 : f32
    %25 = vector.broadcast %cst_20 : f32 to vector<8x288xf32>
    %26 = arith.mulf %22, %25 : vector<8x288xf32>
    %cst_21 = arith.constant 0.000000e+00 : f32
    %27 = vector.broadcast %cst_21 : f32 to vector<8x288xf32>
    %28 = arith.cmpf oge, %26, %27 : vector<8x288xf32>
    %cst_22 = arith.constant 1.000000e+00 : f32
    %cst_23 = arith.constant -1.000000e+00 : f32
    %29 = vector.broadcast %cst_22 : f32 to vector<8x288xf32>
    %30 = vector.broadcast %cst_23 : f32 to vector<8x288xf32>
    %31 = arith.select %28, %29, %30 : vector<8x288xi1>, vector<8x288xf32>
    %32 = math.absf %26 : vector<8x288xf32>
    %cst_24 = arith.constant 0.327591091 : f32
    %33 = vector.broadcast %cst_24 : f32 to vector<8x288xf32>
    %34 = arith.mulf %33, %32 : vector<8x288xf32>
    %cst_25 = arith.constant 1.000000e+00 : f32
    %35 = vector.broadcast %cst_25 : f32 to vector<8x288xf32>
    %36 = arith.addf %35, %34 : vector<8x288xf32>
    %37 = tpu.reciprocal %36 {approx = true} : vector<8x288xf32> -> vector<8x288xf32>
    %cst_26 = arith.constant 1.06140542 : f32
    %38 = vector.broadcast %cst_26 : f32 to vector<8x288xf32>
    %39 = arith.mulf %38, %37 : vector<8x288xf32>
    %cst_27 = arith.constant -1.45315206 : f32
    %40 = vector.broadcast %cst_27 : f32 to vector<8x288xf32>
    %41 = arith.addf %39, %40 : vector<8x288xf32>
    %42 = arith.mulf %41, %37 : vector<8x288xf32>
    %cst_28 = arith.constant 1.42141378 : f32
    %43 = vector.broadcast %cst_28 : f32 to vector<8x288xf32>
    %44 = arith.addf %42, %43 : vector<8x288xf32>
    %45 = arith.mulf %44, %37 : vector<8x288xf32>
    %cst_29 = arith.constant -0.284496725 : f32
    %46 = vector.broadcast %cst_29 : f32 to vector<8x288xf32>
    %47 = arith.addf %45, %46 : vector<8x288xf32>
    %48 = arith.mulf %47, %37 : vector<8x288xf32>
    %cst_30 = arith.constant 0.254829586 : f32
    %49 = vector.broadcast %cst_30 : f32 to vector<8x288xf32>
    %50 = arith.addf %48, %49 : vector<8x288xf32>
    %51 = arith.mulf %50, %37 : vector<8x288xf32>
    %cst_31 = arith.constant 0.000000e+00 : f32
    %52 = vector.broadcast %cst_31 : f32 to vector<8x288xf32>
    %53 = arith.subf %52, %32 : vector<8x288xf32>
    %54 = arith.mulf %53, %32 : vector<8x288xf32>
    %55 = math.exp %54 : vector<8x288xf32>
    %56 = arith.mulf %51, %55 : vector<8x288xf32>
    %cst_32 = arith.constant 1.000000e+00 : f32
    %57 = vector.broadcast %cst_32 : f32 to vector<8x288xf32>
    %58 = arith.subf %57, %56 : vector<8x288xf32>
    %59 = arith.mulf %31, %58 : vector<8x288xf32>
    %cst_33 = arith.constant 1.000000e+00 : f32
    %60 = vector.broadcast %cst_33 : f32 to vector<8x288xf32>
    %61 = arith.addf %60, %59 : vector<8x288xf32>
    %62 = arith.mulf %24, %61 : vector<8x288xf32>
    %63 = arith.truncf %62 : vector<8x288xf32> to vector<8x288xbf16>
    %c0_34 = arith.constant 0 : index
    %c0_35 = arith.constant 0 : index
    %c0_36 = arith.constant 0 : index
    %64 = vector.load %arg5[%c0_34, %c0_35, %c0_36] : memref<1x8x288xbf16, #tpu.memory_space<vmem>>, vector<1x8x288xbf16>
    %65 = vector.shape_cast %64 : vector<1x8x288xbf16> to vector<8x288xbf16>
    %66 = vector.shape_cast %63 : vector<8x288xbf16> to vector<1x8x288xbf16>
    tpu.vector_store %arg5[%c0_34, %c0_35, %c0_36], %66 {strides = array<i32>} : memref<1x8x288xbf16, #tpu.memory_space<vmem>>, vector<1x8x288xbf16>,
    return
  }
  func.func @transform_0(%arg0: i32) -> (i32, i32, i32) {
    %c0_i32 = arith.constant 0 : i32
    %c0_i32_0 = arith.constant 0 : i32
    %c0_i32_1 = arith.constant 0 : i32
    return %arg0, %c0_i32, %c0_i32_0 : i32, i32, i32
  }
  func.func @transform_1(%arg0: i32) -> (i32, i32, i32) {
    %c0_i32 = arith.constant 0 : i32
    %c0_i32_0 = arith.constant 0 : i32
    %c0_i32_1 = arith.constant 0 : i32
    %c0_i32_2 = arith.constant 0 : i32
    return %c0_i32, %c0_i32_0, %c0_i32_1 : i32, i32, i32
  }
  func.func @transform_2(%arg0: i32) -> (i32, i32) {
    %c0_i32 = arith.constant 0 : i32
    %c0_i32_0 = arith.constant 0 : i32
    %c0_i32_1 = arith.constant 0 : i32
    return %c0_i32, %c0_i32_0 : i32, i32
  }
  func.func @transform_3(%arg0: i32) -> (i32, i32) {
    %c0_i32 = arith.constant 0 : i32
    %c0_i32_0 = arith.constant 0 : i32
    %c0_i32_1 = arith.constant 0 : i32
    return %c0_i32, %c0_i32_0 : i32, i32
  }
  func.func @transform_4(%arg0: i32) -> (i32, i32, i32) {
    %c0_i32 = arith.constant 0 : i32
    %c0_i32_0 = arith.constant 0 : i32
    %c0_i32_1 = arith.constant 0 : i32
    return %arg0, %c0_i32, %c0_i32_0 : i32, i32, i32
  }
}

</mosaic_0001>

<llo_original>
// kernel: cbr_forward.2
$region0: #{cbr_forward.2}
  #allocation0 [shape = 'u32[]', space=smem, size = 0x4, offset = 0x4, fixed_abs, tag = 'smem constant byte address 0x4 - core index']
  #allocation1 [shape = 'u32[72,128]{1,0:T(1,128)}', space=vmem, size = 0x9000, scoped, tag = 'internal scratch']
  %s0 = inlined_call_operand.vmem [shape: bf16[2,324,48], index: 0, kind: input, shape index: {}]
  %s1 = inlined_call_operand.vmem [shape: bf16[3,8,48], index: 1, kind: input, shape index: {}]
  %s2 = inlined_call_operand.vmem [shape: f32[8,2], index: 2, kind: output, shape index: {}]
  %s3 = sld [smem:[#allocation0]]
  $region45: #{cbr_forward.2} parent=0
    _
  %s5 = ssub.s32 1, %s3
  %s6 = scalar_select 0, %s5, %s3
  loop: start=0, step=1, limit=4
  $region2: #{cbr_forward.2} parent=0 // loop_pre_header
    _
  $region3: #{cbr_forward.2} parent=0 // loop_header
    %s8 = sphi 0, %s12
    %p9 = scmp.ge.s32.totalorder %s8, 4
    %s18 = sphi 0, %s20
    %s21 = sphi 0, %s18
    %s22 = sphi 0, %s21
    %s38 = sphi 0, %s22
    %s42 = sphi 0, %s42
    %s44 = sphi 0, %s42
    %s45 = sphi 0, %s44
    %s59 = sphi 0, %s45
    %s63 = sphi 0, %s63
    %s65 = sphi 0, %s63
    %s66 = sphi 0, %s65
    %s80 = sphi 0, %s66
  $region4: #{cbr_forward.2} parent=0 // loop_header_branch
    %11 = sbr.rel (%p9) target = $region8
  $region5: #{cbr_forward.2} parent=0 // loop_body
    %s13 = ssub.s32 %s8, 1
    %s14 = ssub.s32 %s8, 2
    %s15 = sadd.s32 %s8, 1
    %s16 = ssub.s32 %s8, %s15
    %p17 = scmp.eq.s32.totalorder %s16, 0
    %s19 = sadd.s32 %s18, 1
    %s20 = scalar_select %p17, %s18, %s19
    %p23 = pneg %p17
    %p24 = scmp.eq.s32.totalorder %s8, 1
    %p25 = por %p23, %p24
    %p26 = scmp.ne.s32.totalorder %s18, %s21
    %p27 = scmp.eq.s32.totalorder %s8, 0
    %p28 = por %p26, %p27
    %p29 = scmp.ne.s32.totalorder %s18, %s21
    %p30 = scmp.eq.s32.totalorder %s13, 1
    %p31 = por %p29, %p30
    %p32 = scmp.ne.s32.totalorder %s21, %s22
    %p33 = scmp.eq.s32.totalorder %s13, 0
    %p34 = por %p32, %p33
    %p35 = scmp.ne.s32.totalorder %s21, %s22
    %p36 = scmp.eq.s32.totalorder %s14, 1
    %p37 = por %p35, %p36
    %p39 = scmp.ne.s32.totalorder %s22, %s38
    %p40 = scmp.eq.s32.totalorder %s14, 0
    %p41 = por %p39, %p40
    %s43 = sadd.s32 %s42, 1
    %p46 = scmp.eq.s32.totalorder %s8, 1
    %p47 = scmp.ne.s32.totalorder %s42, %s44
    %p48 = scmp.eq.s32.totalorder %s8, 0
    %p49 = por %p47, %p48
    %p50 = scmp.ne.s32.totalorder %s42, %s44
    %p51 = scmp.eq.s32.totalorder %s13, 1
    %p52 = por %p50, %p51
    %p53 = scmp.ne.s32.totalorder %s44, %s45
    %p54 = scmp.eq.s32.totalorder %s13, 0
    %p55 = por %p53, %p54
    %p56 = scmp.ne.s32.totalorder %s44, %s45
    %p57 = scmp.eq.s32.totalorder %s14, 1
    %p58 = por %p56, %p57
    %p60 = scmp.ne.s32.totalorder %s45, %s59
    %p61 = scmp.eq.s32.totalorder %s14, 0
    %p62 = por %p60, %p61
    %s64 = sadd.s32 %s63, 1
    %p67 = scmp.eq.s32.totalorder %s8, 1
    %p68 = scmp.ne.s32.totalorder %s63, %s65
    %p69 = scmp.eq.s32.totalorder %s8, 0
    %p70 = por %p68, %p69
    %p71 = scmp.ne.s32.totalorder %s63, %s65
    %p72 = scmp.eq.s32.totalorder %s13, 1
    %p73 = por %p71, %p72
    %p74 = scmp.ne.s32.totalorder %s65, %s66
    %p75 = scmp.eq.s32.totalorder %s13, 0
    %p76 = por %p74, %p75
    %p77 = scmp.ne.s32.totalorder %s65, %s66
    %p78 = scmp.eq.s32.totalorder %s14, 1
    %p79 = por %p77, %p78
    %p81 = scmp.ne.s32.totalorder %s66, %s80
    %p82 = scmp.eq.s32.totalorder %s14, 0
    %p83 = por %p81, %p82
    %p84 = scmp.le.s32.totalorder 1, %s8
    %p85 = scmp.lt.s32.totalorder %s8, 3
    %p86 = pnand %p84, %p85
    %p87 = pneg %p86
    // Predicated region
    $region9: #{cbr_forward.2} parent=5 // pred_check
      _
    $region10: #{cbr_forward.2} parent=5 // pred_check_branch
      %89 = sbr.rel (%p86) target = $region12
    $region11: #{cbr_forward.2} parent=5 // pred_region
      %s90 = ssub.s32 %s8, 1
      // Predicated region
      $region13: #{cbr_forward.2} parent=11 // pred_check
        %p91 = pneg %p55
      $region14: #{cbr_forward.2} parent=11 // pred_check_branch
        %93 = sbr.rel (%p91) target = $region16
      $region15: #{cbr_forward.2} parent=11 // pred_region
        _
      $region16: #{cbr_forward.2} parent=11 // pred_fallthru
        _
    $region12: #{cbr_forward.2} parent=5 // pred_fallthru
      _
    %p94 = scmp.lt.s32.totalorder %s8, 2
    // Predicated region
    $region17: #{cbr_forward.2} parent=5 // pred_check
      %p95 = pneg %p94
    $region18: #{cbr_forward.2} parent=5 // pred_check_branch
      %97 = sbr.rel (%p95) target = $region20
    $region19: #{cbr_forward.2} parent=5 // pred_region
      // Predicated region
      $region21: #{cbr_forward.2} parent=19 // pred_check
        %p98 = pneg %p28
      $region22: #{cbr_forward.2} parent=19 // pred_check_branch
        %100 = sbr.rel (%p98) target = $region24
      $region23: #{cbr_forward.2} parent=19 // pred_region
        %p101 = scmp.lt.s32.totalorder %s8, 1
        %s102 = scalar_select %p101, %s8, 1
        %s103 = smul.addr %s102, 41
        %s104 = smul.addr %s103, 4
        %s105 = scalar_lea.vmem %s0, %s104
      $region24: #{cbr_forward.2} parent=19 // pred_fallthru
        _
    $region20: #{cbr_forward.2} parent=5 // pred_fallthru
      _
    %p106 = scmp.le.s32.totalorder 1, %s8
    %p107 = scmp.lt.s32.totalorder %s8, 3
    %p108 = pnand %p106, %p107
    %p109 = pneg %p108
    // Predicated region
    $region25: #{cbr_forward.2} parent=5 // pred_check
      _
    $region26: #{cbr_forward.2} parent=5 // pred_check_branch
      %111 = sbr.rel (%p108) target = $region28
    $region27: #{cbr_forward.2} parent=5 // pred_region
      %s112 = ssub.s32 %s8, 1
      %p113 = scmp.lt.s32.totalorder %s13, 1
      %s114 = scalar_select %p113, %s13, 1
      %s115 = smul.addr %s114, 41
      %s116 = smul.addr %s115, 4
      %s117 = scalar_lea.vmem %s0, %s116
      %p118 = pneg %p34
      %p119 = pneg %p31
      %p120 = pneg %p55
      %p121 = pneg %p52
      %p122 = pneg %p76
      %p123 = pneg %p73
      %p124 = scmp.lt.s32.totalorder %s13, 1
      %s125 = scalar_select %p124, %s13, 1
      %s126 = smul.addr %s125, 41
      %s127 = smul.addr %s126, 4
      %s128 = scalar_lea.vmem %s0, %s127
      %p130 = scmp.eq.s32.totalorder %s13, 0
      // Predicated region
      $region29: #{cbr_forward.2} parent=27 // pred_check
        %p131 = pneg %p130
      $region30: #{cbr_forward.2} parent=27 // pred_check_branch
        %133 = sbr.rel (%p131) target = $region32
      $region31: #{cbr_forward.2} parent=27 // pred_region
        %vm134 = vcmask 15360
        %135 = vst.msk [vmem:[%s2] sm:$0xff] %vm134, 0.0
      $region32: #{cbr_forward.2} parent=27 // pred_fallthru
        _
      %v136 = vld [vmem:[%s128] sm:$0xf]
      %v137 = vld [vmem:[%s128 + $0x4] sm:$0xf]
      %v138 = vld [vmem:[%s128 + $0x8] sm:$0xf]
      %v139 = vld [vmem:[%s128 + $0xc] sm:$0xf]
      %v140 = vld [vmem:[%s128 + $0x10] sm:$0xf]
      %v141 = vld [vmem:[%s128 + $0x14] sm:$0xf]
      %v142 = vld [vmem:[%s128 + $0x18] sm:$0xf]
      %v143 = vld [vmem:[%s128 + $0x1c] sm:$0xf]
      %v144 = vld [vmem:[%s128 + $0x20] sm:$0xf]
      %v145 = vld [vmem:[%s128 + $0x24] sm:$0xf]
      %v146 = vld [vmem:[%s128 + $0x28] sm:$0xf]
      %v147 = vld [vmem:[%s128 + $0x2c] sm:$0xf]
      %v148 = vld [vmem:[%s128 + $0x30] sm:$0xf]
      %v149 = vld [vmem:[%s128 + $0x34] sm:$0xf]
      %v150 = vld [vmem:[%s128 + $0x38] sm:$0xf]
      %v151 = vld [vmem:[%s128 + $0x3c] sm:$0xf]
      %v152 = vld [vmem:[%s128 + $0x40] sm:$0xf]
      %v153 = vld [vmem:[%s128 + $0x44] sm:$0xf]
      %v154 = vld [vmem:[%s128 + $0x48] sm:$0xf]
      %v155 = vld [vmem:[%s128 + $0x4c] sm:$0xf]
      %v156 = vld [vmem:[%s128 + $0x50] sm:$0xf]
      %v157 = vld [vmem:[%s128 + $0x54] sm:$0xf]
      %v158 = vld [vmem:[%s128 + $0x58] sm:$0xf]
      %v159 = vld [vmem:[%s128 + $0x5c] sm:$0xf]
      %v160 = vld [vmem:[%s128 + $0x60] sm:$0xf]
      %v161 = vld [vmem:[%s128 + $0x64] sm:$0xf]
      %v162 = vld [vmem:[%s128 + $0x68] sm:$0xf]
      %v163 = vld [vmem:[%s128 + $0x6c] sm:$0xf]
      %v164 = vld [vmem:[%s128 + $0x70] sm:$0xf]
      %v165 = vld [vmem:[%s128 + $0x74] sm:$0xf]
      %v166 = vld [vmem:[%s128 + $0x78] sm:$0xf]
      %v167 = vld [vmem:[%s128 + $0x7c] sm:$0xf]
      %v168 = vld [vmem:[%s128 + $0x80] sm:$0xf]
      %v169 = vld [vmem:[%s128 + $0x84] sm:$0xf]
      %v170 = vld [vmem:[%s128 + $0x88] sm:$0xf]
      %v171 = vld [vmem:[%s128 + $0x8c] sm:$0xf]
      %v172 = vld [vmem:[%s1] sm:$0xf]
      %v173 = vld [vmem:[%s128 + $0x8] sm:$0xe]
      %v174 = vld [vmem:[%s128 + $0x90] sm:$0xf]
      %v175 = vld [vmem:[%s128 + $0x94] sm:$0xf]
      %v176 = vld [vmem:[%s128 + $0x98] sm:$0x1]
      %s177 = scalar_lea.vmem %s1, 4
      %v178 = vld [vmem:[%s177] sm:$0xf]
      %v216 = vunpack.c.l.b16 %v173
      %v217 = vunpack.c.l.b16 %v139
      %v218 = vunpack.c.l.b16 %v140
      %v219 = vunpack.c.l.b16 %v141
      %v220 = vunpack.c.l.b16 %v142
      %v221 = vunpack.c.l.b16 %v143
      %v222 = vunpack.c.l.b16 %v144
      %v223 = vunpack.c.l.b16 %v145
      %v224 = vunpack.c.l.b16 %v146
      %v225 = vunpack.c.l.b16 %v147
      %v226 = vunpack.c.l.b16 %v148
      %v227 = vunpack.c.l.b16 %v149
      %v228 = vunpack.c.l.b16 %v150
      %v229 = vunpack.c.l.b16 %v151
      %v230 = vunpack.c.l.b16 %v152
      %v231 = vunpack.c.l.b16 %v153
      %v232 = vunpack.c.l.b16 %v154
      %v233 = vunpack.c.l.b16 %v155
      %v234 = vunpack.c.l.b16 %v156
      %v235 = vunpack.c.l.b16 %v157
      %v236 = vunpack.c.l.b16 %v158
      %v237 = vunpack.c.l.b16 %v159
      %v238 = vunpack.c.l.b16 %v160
      %v239 = vunpack.c.l.b16 %v161
      %v240 = vunpack.c.l.b16 %v162
      %v241 = vunpack.c.l.b16 %v163
      %v242 = vunpack.c.l.b16 %v164
      %v243 = vunpack.c.l.b16 %v165
      %v244 = vunpack.c.l.b16 %v166
      %v245 = vunpack.c.l.b16 %v167
      %v246 = vunpack.c.l.b16 %v168
      %v247 = vunpack.c.l.b16 %v169
      %v248 = vunpack.c.l.b16 %v170
      %v249 = vunpack.c.l.b16 %v171
      %v250 = vunpack.c.l.b16 %v174
      %v251 = vunpack.c.l.b16 %v175
      %v252 = vunpack.c.l.b16 %v176
      %v253 = vpack.c.b16 %v217, %v216
      %v254 = vpack.c.b16 %v219, %v218
      %v255 = vpack.c.b16 %v221, %v220
      %v256 = vpack.c.b16 %v223, %v222
      %v257 = vpack.c.b16 %v225, %v224
      %v258 = vpack.c.b16 %v227, %v226
      %v259 = vpack.c.b16 %v229, %v228
      %v260 = vpack.c.b16 %v231, %v230
      %v261 = vpack.c.b16 %v233, %v232
      %v262 = vpack.c.b16 %v235, %v234
      %v263 = vpack.c.b16 %v237, %v236
      %v264 = vpack.c.b16 %v239, %v238
      %v265 = vpack.c.b16 %v241, %v240
      %v266 = vpack.c.b16 %v243, %v242
      %v267 = vpack.c.b16 %v245, %v244
      %v268 = vpack.c.b16 %v247, %v246
      %v269 = vpack.c.b16 %v249, %v248
      %v270 = vpack.c.b16 %v251, %v250
      %v271 = vpack.c.b16 %v252, %v252
      %vm272 = vcmask 1046528
      %v273 = vrot.slane %v253, 1
      %v274 = vrot.slane %v254, 1
      %v275 = vsel %vm272, %v273, %v274
      %v276 = vrot.slane %v255, 1
      %v277 = vsel %vm272, %v274, %v276
      %v278 = vrot.slane %v256, 1
      %v279 = vsel %vm272, %v276, %v278
      %v280 = vrot.slane %v257, 1
      %v281 = vsel %vm272, %v278, %v280
      %v282 = vrot.slane %v258, 1
      %v283 = vsel %vm272, %v280, %v282
      %v284 = vrot.slane %v259, 1
      %v285 = vsel %vm272, %v282, %v284
      %v286 = vrot.slane %v260, 1
      %v287 = vsel %vm272, %v284, %v286
      %v288 = vrot.slane %v261, 1
      %v289 = vsel %vm272, %v286, %v288
      %v290 = vrot.slane %v262, 1
      %v291 = vsel %vm272, %v288, %v290
      %v292 = vrot.slane %v263, 1
      %v293 = vsel %vm272, %v290, %v292
      %v294 = vrot.slane %v264, 1
      %v295 = vsel %vm272, %v292, %v294
      %v296 = vrot.slane %v265, 1
      %v297 = vsel %vm272, %v294, %v296
      %v298 = vrot.slane %v266, 1
      %v299 = vsel %vm272, %v296, %v298
      %v300 = vrot.slane %v267, 1
      %v301 = vsel %vm272, %v298, %v300
      %v302 = vrot.slane %v268, 1
      %v303 = vsel %vm272, %v300, %v302
      %v304 = vrot.slane %v269, 1
      %v305 = vsel %vm272, %v302, %v304
      %v306 = vrot.slane %v270, 1
      %v307 = vsel %vm272, %v304, %v306
      %v308 = vrot.slane %v271, 1
      %v309 = vsel %vm272, %v306, %v308
      %vm310 = vcmask 392192
      %v312 = vsel %vm310, %v178, 0
      %v315 = vsel %vm310, %v275, 0
      %v318 = vsel %vm310, %v277, 0
      %v321 = vsel %vm310, %v279, 0
      %v324 = vsel %vm310, %v281, 0
      %v327 = vsel %vm310, %v283, 0
      %v330 = vsel %vm310, %v285, 0
      %v333 = vsel %vm310, %v287, 0
      %v336 = vsel %vm310, %v289, 0
      %v339 = vsel %vm310, %v291, 0
      %v342 = vsel %vm310, %v293, 0
      %v345 = vsel %vm310, %v295, 0
      %v348 = vsel %vm310, %v297, 0
      %v351 = vsel %vm310, %v299, 0
      %v354 = vsel %vm310, %v301, 0
      %v357 = vsel %vm310, %v303, 0
      %v360 = vsel %vm310, %v305, 0
      %v363 = vsel %vm310, %v307, 0
      %v366 = vsel %vm310, %v309, 0
      %368 = vmatpush.bf16.xpose.msra.mxu0 %v336
      %369 = vmatpush.bf16.xpose.msra.mxu0 %v333
      %370 = vmatpush.bf16.xpose.msra.mxu0 %v330
      %371 = vmatpush.bf16.xpose.msra.mxu0 %v327
      %372 = vmatpush.bf16.xpose.msra.mxu0 %v324
      %373 = vmatpush.bf16.xpose.msra.mxu0 %v321
      %374 = vmatpush.bf16.xpose.msra.mxu0 %v318
      %375 = vmatpush.bf16.xpose.msra.mxu0 %v315
      %376 = vmatmul.bf16.gmra.mxu0 %v312
      %v377 = vpop.f32.mrf.mxu0
      %v378 = vadd.f32 0.0, %v377
      %v379 = vpop.f32.mrf.mxu0
      %380 = vdwg.mxu0
      %381 = vmatpush.bf16.xpose.msra.mxu0 %v360
      %382 = vmatpush.bf16.xpose.msra.mxu0 %v357
      %383 = vmatpush.bf16.xpose.msra.mxu0 %v354
      %384 = vmatpush.bf16.xpose.msra.mxu0 %v351
      %385 = vmatpush.bf16.xpose.msra.mxu0 %v348
      %386 = vmatpush.bf16.xpose.msra.mxu0 %v345
      %387 = vmatpush.bf16.xpose.msra.mxu0 %v342
      %388 = vmatpush.bf16.xpose.msra.mxu0 %v339
      %389 = vmatmul.bf16.gmra.mxu0 %v312
      %v390 = vpop.f32.mrf.mxu0
      %v391 = vadd.f32 0.0, %v390
      %v392 = vpop.f32.mrf.mxu0
      %393 = vdwg.mxu0
      %394 = vmatpush.bf16.xpose.msra.mxu0 0
      %395 = vmatpush.bf16.xpose.msra.mxu0 0
      %396 = vmatpush.bf16.xpose.msra.mxu0 0
      %397 = vmatpush.bf16.xpose.msra.mxu0 0
      %398 = vmatpush.bf16.xpose.msra.mxu0 0
      %399 = vmatpush.bf16.xpose.msra.mxu0 0
      %400 = vmatpush.bf16.xpose.msra.mxu0 %v366
      %401 = vmatpush.bf16.xpose.msra.mxu0 %v363
      %402 = vmatmul.bf16.gmra.mxu0 %v312
      %v403 = vpop.f32.mrf.mxu0
      %v404 = vadd.f32 0.0, %v403
      %v405 = vpop.f32.mrf.mxu0
      %406 = vdwg.mxu0
      %v410 = vunpack.c.l.b16 %v136
      %v411 = vunpack.c.l.b16 %v137
      %v412 = vunpack.c.l.b16 %v138
      %v413 = vpack.c.b16 %v411, %v410
      %v414 = vpack.c.b16 %v217, %v412
      %v416 = vsel %vm310, %v172, 0
      %v419 = vsel %vm310, %v413, 0
      %v422 = vsel %vm310, %v414, 0
      %v425 = vsel %vm310, %v254, 0
      %v428 = vsel %vm310, %v255, 0
      %v431 = vsel %vm310, %v256, 0
      %v434 = vsel %vm310, %v257, 0
      %v437 = vsel %vm310, %v258, 0
      %v440 = vsel %vm310, %v259, 0
      %v443 = vsel %vm310, %v260, 0
      %v446 = vsel %vm310, %v261, 0
      %v449 = vsel %vm310, %v262, 0
      %v452 = vsel %vm310, %v263, 0
      %v455 = vsel %vm310, %v264, 0
      %v458 = vsel %vm310, %v265, 0
      %v461 = vsel %vm310, %v266, 0
      %v464 = vsel %vm310, %v267, 0
      %v467 = vsel %vm310, %v268, 0
      %v470 = vsel %vm310, %v269, 0
      %472 = vmatpush.bf16.xpose.msra.mxu0 %v440
      %473 = vmatpush.bf16.xpose.msra.mxu0 %v437
      %474 = vmatpush.bf16.xpose.msra.mxu0 %v434
      %475 = vmatpush.bf16.xpose.msra.mxu0 %v431
      %476 = vmatpush.bf16.xpose.msra.mxu0 %v428
      %477 = vmatpush.bf16.xpose.msra.mxu0 %v425
      %478 = vmatpush.bf16.xpose.msra.mxu0 %v422
      %479 = vmatpush.bf16.xpose.msra.mxu0 %v419
      %480 = vmatmul.bf16.gmra.mxu0 %v416
      %v481 = vpop.f32.mrf.mxu0
      %v482 = vadd.f32 %v378, %v481
      %v483 = vpop.f32.mrf.mxu0
      %484 = vdwg.mxu0
      %485 = vmatpush.bf16.xpose.msra.mxu0 %v464
      %486 = vmatpush.bf16.xpose.msra.mxu0 %v461
      %487 = vmatpush.bf16.xpose.msra.mxu0 %v458
      %488 = vmatpush.bf16.xpose.msra.mxu0 %v455
      %489 = vmatpush.bf16.xpose.msra.mxu0 %v452
      %490 = vmatpush.bf16.xpose.msra.mxu0 %v449
      %491 = vmatpush.bf16.xpose.msra.mxu0 %v446
      %492 = vmatpush.bf16.xpose.msra.mxu0 %v443
      %493 = vmatmul.bf16.gmra.mxu0 %v416
      %v494 = vpop.f32.mrf.mxu0
      %v495 = vadd.f32 %v391, %v494
      %v496 = vpop.f32.mrf.mxu0
      %497 = vdwg.mxu0
      %498 = vmatpush.bf16.xpose.msra.mxu0 0
      %499 = vmatpush.bf16.xpose.msra.mxu0 0
      %500 = vmatpush.bf16.xpose.msra.mxu0 0
      %501 = vmatpush.bf16.xpose.msra.mxu0 0
      %502 = vmatpush.bf16.xpose.msra.mxu0 0
      %503 = vmatpush.bf16.xpose.msra.mxu0 0
      %504 = vmatpush.bf16.xpose.msra.mxu0 %v470
      %505 = vmatpush.bf16.xpose.msra.mxu0 %v467
      %506 = vmatmul.bf16.gmra.mxu0 %v416
      %v507 = vpop.f32.mrf.mxu0
      %v508 = vadd.f32 %v404, %v507
      %v509 = vpop.f32.mrf.mxu0
      %510 = vdwg.mxu0
      %v511 = vld [vmem:[%s128 + $0x10] sm:$0xc]
      %v512 = vld [vmem:[%s128 + $0x14] sm:$0xf]
      %v513 = vld [vmem:[%s128 + $0x18] sm:$0xf]
      %v514 = vld [vmem:[%s128 + $0x1c] sm:$0xf]
      %v515 = vld [vmem:[%s128 + $0x20] sm:$0xf]
      %v516 = vld [vmem:[%s128 + $0x24] sm:$0xf]
      %v517 = vld [vmem:[%s128 + $0x28] sm:$0xf]
      %v518 = vld [vmem:[%s128 + $0x2c] sm:$0xf]
      %v519 = vld [vmem:[%s128 + $0x30] sm:$0xf]
      %v520 = vld [vmem:[%s128 + $0x34] sm:$0xf]
      %v521 = vld [vmem:[%s128 + $0x38] sm:$0xf]
      %v522 = vld [vmem:[%s128 + $0x3c] sm:$0xf]
      %v523 = vld [vmem:[%s128 + $0x40] sm:$0xf]
      %v524 = vld [vmem:[%s128 + $0x44] sm:$0xf]
      %v525 = vld [vmem:[%s128 + $0x48] sm:$0xf]
      %v526 = vld [vmem:[%s128 + $0x4c] sm:$0xf]
      %v527 = vld [vmem:[%s128 + $0x50] sm:$0xf]
      %v528 = vld [vmem:[%s128 + $0x54] sm:$0xf]
      %v529 = vld [vmem:[%s128 + $0x58] sm:$0xf]
      %v530 = vld [vmem:[%s128 + $0x5c] sm:$0xf]
      %v531 = vld [vmem:[%s128 + $0x60] sm:$0xf]
      %v532 = vld [vmem:[%s128 + $0x64] sm:$0xf]
      %v533 = vld [vmem:[%s128 + $0x68] sm:$0xf]
      %v534 = vld [vmem:[%s128 + $0x6c] sm:$0xf]
      %v535 = vld [vmem:[%s128 + $0x70] sm:$0xf]
      %v536 = vld [vmem:[%s128 + $0x74] sm:$0xf]
      %v537 = vld [vmem:[%s128 + $0x78] sm:$0xf]
      %v538 = vld [vmem:[%s128 + $0x7c] sm:$0xf]
      %v539 = vld [vmem:[%s128 + $0x80] sm:$0xf]
      %v540 = vld [vmem:[%s128 + $0x84] sm:$0xf]
      %v541 = vld [vmem:[%s128 + $0x88] sm:$0xf]
      %v542 = vld [vmem:[%s128 + $0x8c] sm:$0xf]
      %v543 = vld [vmem:[%s128 + $0x90] sm:$0xf]
      %v544 = vld [vmem:[%s128 + $0x94] sm:$0xf]
      %v545 = vld [vmem:[%s128 + $0x98] sm:$0xf]
      %v546 = vld [vmem:[%s128 + $0x9c] sm:$0xf]
      %v547 = vld [vmem:[%s128 + $0xa0] sm:$0x3]
      %s548 = scalar_lea.vmem %s1, 8
      %v549 = vld [vmem:[%s548] sm:$0xf]
      %v587 = vunpack.c.l.b16 %v511
      %v588 = vunpack.c.l.b16 %v512
      %v589 = vunpack.c.l.b16 %v513
      %v590 = vunpack.c.l.b16 %v514
      %v591 = vunpack.c.l.b16 %v515
      %v592 = vunpack.c.l.b16 %v516
      %v593 = vunpack.c.l.b16 %v517
      %v594 = vunpack.c.l.b16 %v518
      %v595 = vunpack.c.l.b16 %v519
      %v596 = vunpack.c.l.b16 %v520
      %v597 = vunpack.c.l.b16 %v521
      %v598 = vunpack.c.l.b16 %v522
      %v599 = vunpack.c.l.b16 %v523
      %v600 = vunpack.c.l.b16 %v524
      %v601 = vunpack.c.l.b16 %v525
      %v602 = vunpack.c.l.b16 %v526
      %v603 = vunpack.c.l.b16 %v527
      %v604 = vunpack.c.l.b16 %v528
      %v605 = vunpack.c.l.b16 %v529
      %v606 = vunpack.c.l.b16 %v530
      %v607 = vunpack.c.l.b16 %v531
      %v608 = vunpack.c.l.b16 %v532
      %v609 = vunpack.c.l.b16 %v533
      %v610 = vunpack.c.l.b16 %v534
      %v611 = vunpack.c.l.b16 %v535
      %v612 = vunpack.c.l.b16 %v536
      %v613 = vunpack.c.l.b16 %v537
      %v614 = vunpack.c.l.b16 %v538
      %v615 = vunpack.c.l.b16 %v539
      %v616 = vunpack.c.l.b16 %v540
      %v617 = vunpack.c.l.b16 %v541
      %v618 = vunpack.c.l.b16 %v542
      %v619 = vunpack.c.l.b16 %v543
      %v620 = vunpack.c.l.b16 %v544
      %v621 = vunpack.c.l.b16 %v545
      %v622 = vunpack.c.l.b16 %v546
      %v623 = vunpack.c.l.b16 %v547
      %v624 = vpack.c.b16 %v588, %v587
      %v625 = vpack.c.b16 %v590, %v589
      %v626 = vpack.c.b16 %v592, %v591
      %v627 = vpack.c.b16 %v594, %v593
      %v628 = vpack.c.b16 %v596, %v595
      %v629 = vpack.c.b16 %v598, %v597
      %v630 = vpack.c.b16 %v600, %v599
      %v631 = vpack.c.b16 %v602, %v601
      %v632 = vpack.c.b16 %v604, %v603
      %v633 = vpack.c.b16 %v606, %v605
      %v634 = vpack.c.b16 %v608, %v607
      %v635 = vpack.c.b16 %v610, %v609
      %v636 = vpack.c.b16 %v612, %v611
      %v637 = vpack.c.b16 %v614, %v613
      %v638 = vpack.c.b16 %v616, %v615
      %v639 = vpack.c.b16 %v618, %v617
      %v640 = vpack.c.b16 %v620, %v619
      %v641 = vpack.c.b16 %v622, %v621
      %v642 = vpack.c.b16 %v623, %v623
      %vm643 = vcmask 1045504
      %v644 = vrot.slane %v624, 2
      %v645 = vrot.slane %v625, 2
      %v646 = vsel %vm643, %v644, %v645
      %v647 = vrot.slane %v626, 2
      %v648 = vsel %vm643, %v645, %v647
      %v649 = vrot.slane %v627, 2
      %v650 = vsel %vm643, %v647, %v649
      %v651 = vrot.slane %v628, 2
      %v652 = vsel %vm643, %v649, %v651
      %v653 = vrot.slane %v629, 2
      %v654 = vsel %vm643, %v651, %v653
      %v655 = vrot.slane %v630, 2
      %v656 = vsel %vm643, %v653, %v655
      %v657 = vrot.slane %v631, 2
      %v658 = vsel %vm643, %v655, %v657
      %v659 = vrot.slane %v632, 2
      %v660 = vsel %vm643, %v657, %v659
      %v661 = vrot.slane %v633, 2
      %v662 = vsel %vm643, %v659, %v661
      %v663 = vrot.slane %v634, 2
      %v664 = vsel %vm643, %v661, %v663
      %v665 = vrot.slane %v635, 2
      %v666 = vsel %vm643, %v663, %v665
      %v667 = vrot.slane %v636, 2
      %v668 = vsel %vm643, %v665, %v667
      %v669 = vrot.slane %v637, 2
      %v670 = vsel %vm643, %v667, %v669
      %v671 = vrot.slane %v638, 2
      %v672 = vsel %vm643, %v669, %v671
      %v673 = vrot.slane %v639, 2
      %v674 = vsel %vm643, %v671, %v673
      %v675 = vrot.slane %v640, 2
      %v676 = vsel %vm643, %v673, %v675
      %v677 = vrot.slane %v641, 2
      %v678 = vsel %vm643, %v675, %v677
      %v679 = vrot.slane %v642, 2
      %v680 = vsel %vm643, %v677, %v679
      %v682 = vsel %vm310, %v549, 0
      %v685 = vsel %vm310, %v646, 0
      %v688 = vsel %vm310, %v648, 0
      %v691 = vsel %vm310, %v650, 0
      %v694 = vsel %vm310, %v652, 0
      %v697 = vsel %vm310, %v654, 0
      %v700 = vsel %vm310, %v656, 0
      %v703 = vsel %vm310, %v658, 0
      %v706 = vsel %vm310, %v660, 0
      %v709 = vsel %vm310, %v662, 0
      %v712 = vsel %vm310, %v664, 0
      %v715 = vsel %vm310, %v666, 0
      %v718 = vsel %vm310, %v668, 0
      %v721 = vsel %vm310, %v670, 0
      %v724 = vsel %vm310, %v672, 0
      %v727 = vsel %vm310, %v674, 0
      %v730 = vsel %vm310, %v676, 0
      %v733 = vsel %vm310, %v678, 0
      %v736 = vsel %vm310, %v680, 0
      %738 = vmatpush.bf16.xpose.msra.mxu0 %v706
      %739 = vmatpush.bf16.xpose.msra.mxu0 %v703
      %740 = vmatpush.bf16.xpose.msra.mxu0 %v700
      %741 = vmatpush.bf16.xpose.msra.mxu0 %v697
      %742 = vmatpush.bf16.xpose.msra.mxu0 %v694
      %743 = vmatpush.bf16.xpose.msra.mxu0 %v691
      %744 = vmatpush.bf16.xpose.msra.mxu0 %v688
      %745 = vmatpush.bf16.xpose.msra.mxu0 %v685
      %746 = vmatmul.bf16.gmra.mxu0 %v682
      %v747 = vpop.f32.mrf.mxu0
      %v748 = vadd.f32 0.0, %v747
      %v749 = vpop.f32.mrf.mxu0
      %750 = vdwg.mxu0
      %751 = vmatpush.bf16.xpose.msra.mxu0 %v730
      %752 = vmatpush.bf16.xpose.msra.mxu0 %v727
      %753 = vmatpush.bf16.xpose.msra.mxu0 %v724
      %754 = vmatpush.bf16.xpose.msra.mxu0 %v721
      %755 = vmatpush.bf16.xpose.msra.mxu0 %v718
      %756 = vmatpush.bf16.xpose.msra.mxu0 %v715
      %757 = vmatpush.bf16.xpose.msra.mxu0 %v712
      %758 = vmatpush.bf16.xpose.msra.mxu0 %v709
      %759 = vmatmul.bf16.gmra.mxu0 %v682
      %v760 = vpop.f32.mrf.mxu0
      %v761 = vadd.f32 0.0, %v760
      %v762 = vpop.f32.mrf.mxu0
      %763 = vdwg.mxu0
      %764 = vmatpush.bf16.xpose.msra.mxu0 0
      %765 = vmatpush.bf16.xpose.msra.mxu0 0
      %766 = vmatpush.bf16.xpose.msra.mxu0 0
      %767 = vmatpush.bf16.xpose.msra.mxu0 0
      %768 = vmatpush.bf16.xpose.msra.mxu0 0
      %769 = vmatpush.bf16.xpose.msra.mxu0 0
      %770 = vmatpush.bf16.xpose.msra.mxu0 %v736
      %771 = vmatpush.bf16.xpose.msra.mxu0 %v733
      %772 = vmatmul.bf16.gmra.mxu0 %v682
      %v773 = vpop.f32.mrf.mxu0
      %v774 = vadd.f32 0.0, %v773
      %v775 = vpop.f32.mrf.mxu0
      %776 = vdwg.mxu0
      %v777 = vadd.f32 %v482, %v748
      %v778 = vadd.f32 %v495, %v761
      %v779 = vadd.f32 %v508, %v774
      %v780 = vlaneseq
      %v781 = vand.u32 %v780, 127
      %v782 = vadd.s32 %v781, 128
      %v783 = vadd.s32 %v781, 256
      %vm784 = vcmp.lt.s32.totalorder %v781, 0
      %v785 = vsub.s32 0, %v781
      %v786 = vsel %vm784, %v785, %v781
      %v787 = vand.u32 %v786, 65535
      %v788 = vshrl.u32 %v786, 16
      %v790 = vmul.u32 %v787, 14564
      %v791 = vmul.u32 %v787, 58254
      %v792 = vmul.u32 %v788, 14564
      %v793 = vmul.u32 %v788, 58254
      %v794 = vshll.u32 %v791, 16
      %v795 = vshrl.u32 %v791, 16
      %v796 = vshll.u32 %v792, 16
      %v797 = vshrl.u32 %v792, 16
      %vm798 = vc.u32 %v790, %v794
      %v799 = vsel %vm798, 1, 0
      %v800 = vadd.s32 %v790, %v794
      %v801 = vadd.s32 %v793, %v799
      %vm802 = vc.u32 %v800, %v796
      %v803 = vsel %vm802, 1, 0
      %v804 = vadd.s32 %v800, %v796
      %v805 = vadd.s32 %v801, %v803
      %v806 = vadd.s32 %v805, %v795
      %v807 = vadd.s32 %v806, %v797
      %v808 = vshrl.u32 %v807, 4
      %v809 = vmul.u32 %v808, 18
      %v810 = vsub.s32 %v786, %v809
      %v811 = vsub.s32 0, %v810
      %v812 = vsel %vm784, %v811, %v810
      %vm813 = vcmp.lt.s32.totalorder %v782, 0
      %v814 = vsub.s32 0, %v782
      %v815 = vsel %vm813, %v814, %v782
      %v816 = vand.u32 %v815, 65535
      %v817 = vshrl.u32 %v815, 16
      %v819 = vmul.u32 %v816, 14564
      %v820 = vmul.u32 %v816, 58254
      %v821 = vmul.u32 %v817, 14564
      %v822 = vmul.u32 %v817, 58254
      %v823 = vshll.u32 %v820, 16
      %v824 = vshrl.u32 %v820, 16
      %v825 = vshll.u32 %v821, 16
      %v826 = vshrl.u32 %v821, 16
      %vm827 = vc.u32 %v819, %v823
      %v828 = vsel %vm827, 1, 0
      %v829 = vadd.s32 %v819, %v823
      %v830 = vadd.s32 %v822, %v828
      %vm831 = vc.u32 %v829, %v825
      %v832 = vsel %vm831, 1, 0
      %v833 = vadd.s32 %v829, %v825
      %v834 = vadd.s32 %v830, %v832
      %v835 = vadd.s32 %v834, %v824
      %v836 = vadd.s32 %v835, %v826
      %v837 = vshrl.u32 %v836, 4
      %v838 = vmul.u32 %v837, 18
      %v839 = vsub.s32 %v815, %v838
      %v840 = vsub.s32 0, %v839
      %v841 = vsel %vm813, %v840, %v839
      %vm842 = vcmp.lt.s32.totalorder %v783, 0
      %v843 = vsub.s32 0, %v783
      %v844 = vsel %vm842, %v843, %v783
      %v845 = vand.u32 %v844, 65535
      %v846 = vshrl.u32 %v844, 16
      %v848 = vmul.u32 %v845, 14564
      %v849 = vmul.u32 %v845, 58254
      %v850 = vmul.u32 %v846, 14564
      %v851 = vmul.u32 %v846, 58254
      %v852 = vshll.u32 %v849, 16
      %v853 = vshrl.u32 %v849, 16
      %v854 = vshll.u32 %v850, 16
      %v855 = vshrl.u32 %v850, 16
      %vm856 = vc.u32 %v848, %v852
      %v857 = vsel %vm856, 1, 0
      %v858 = vadd.s32 %v848, %v852
      %v859 = vadd.s32 %v851, %v857
      %vm860 = vc.u32 %v858, %v854
      %v861 = vsel %vm860, 1, 0
      %v862 = vadd.s32 %v858, %v854
      %v863 = vadd.s32 %v859, %v861
      %v864 = vadd.s32 %v863, %v853
      %v865 = vadd.s32 %v864, %v855
      %v866 = vshrl.u32 %v865, 4
      %v867 = vmul.u32 %v866, 18
      %v868 = vsub.s32 %v844, %v867
      %v869 = vsub.s32 0, %v868
      %v870 = vsel %vm842, %v869, %v868
      %vm871 = vcmp.ne.s32.totalorder %v812, 0
      %vm872 = vcmp.ne.s32.totalorder %v841, 0
      %vm873 = vcmp.ne.s32.totalorder %v870, 0
      %vm874 = vcmp.lt.s32.totalorder %v812, 0
      %vm875 = vcmp.lt.s32.totalorder %v841, 0
      %vm876 = vcmp.lt.s32.totalorder %v870, 0
      %vm877 = vmand %vm874, %vm871
      %vm878 = vmand %vm875, %vm872
      %vm879 = vmand %vm876, %vm873
      %v880 = vadd.s32 %v812, 18
      %v881 = vadd.s32 %v841, 18
      %v882 = vadd.s32 %v870, 18
      %v883 = vsel %vm877, %v880, %v812
      %v884 = vsel %vm878, %v881, %v841
      %v885 = vsel %vm879, %v882, %v870
      %vm886 = vcmp.lt.s32.totalorder %v883, 16
      %vm887 = vcmp.lt.s32.totalorder %v884, 16
      %vm888 = vcmp.lt.s32.totalorder %v885, 16
      %vm889 = vcmp.lt.s32.totalorder %v781, 288
      %vm890 = vcmp.lt.s32.totalorder %v782, 288
      %vm891 = vcmp.lt.s32.totalorder %v783, 288
      %vm892 = vmand %vm886, %vm889
      %vm893 = vmand %vm887, %vm890
      %vm894 = vmand %vm888, %vm891
      %v895 = vsel %vm892, 1, 0
      %v896 = vsel %vm893, 1, 0
      %v897 = vsel %vm894, 1, 0
      %v898 = vcvt.s32.f32 %v895
      %v899 = vcvt.s32.f32 %v896
      %v900 = vcvt.s32.f32 %v897
      %v901 = vmul.f32 %v777, %v898
      %v902 = vmul.f32 %v778, %v899
      %v903 = vmul.f32 %v779, %v900
      %v904 = vld [vmem:[%s2] sm:$0xff]
      %v905 = vadd.f32 %v901, %v902
      %vm906 = vcmask 261120
      %v907 = vsel %vm906, %v903, 0.0
      %v908 = vadd.f32 %v905, %v907
      %909 = vadd.xlane.f32.xlu0 %v908
      %v910 = vpop.xlane.xlu0 %909
      %v911 = vadd.f32 %v904, %v910
      %vm912 = vcmask 7168
      %913 = vst.msk [vmem:[%s2] sm:$0xff] %vm912, %v911
      %v914 = vld [vmem:[%s2] sm:$0xff]
      %v915 = vmul.f32 %v901, %v777
      %v916 = vmul.f32 %v902, %v778
      %v917 = vmul.f32 %v903, %v779
      %v918 = vadd.f32 %v915, %v916
      %v919 = vsel %vm906, %v917, 0.0
      %v920 = vadd.f32 %v918, %v919
      %921 = vadd.xlane.f32.xlu0 %v920
      %v922 = vpop.xlane.xlu0 %921
      %v923 = vadd.f32 %v914, %v922
      %vm924 = vcmask 15368
      %925 = vst.msk [vmem:[%s2] sm:$0xff] %vm924, %v923
      // Predicated region
      $region33: #{cbr_forward.2} parent=27 // pred_check
        %p926 = pneg %p73
      $region34: #{cbr_forward.2} parent=27 // pred_check_branch
        %928 = sbr.rel (%p926) target = $region36
      $region35: #{cbr_forward.2} parent=27 // pred_region
        _
      $region36: #{cbr_forward.2} parent=27 // pred_fallthru
        _
      // Predicated region
      $region37: #{cbr_forward.2} parent=27 // pred_check
        %p929 = pneg %p73
      $region38: #{cbr_forward.2} parent=27 // pred_check_branch
        %931 = sbr.rel (%p929) target = $region40
      $region39: #{cbr_forward.2} parent=27 // pred_region
        _
      $region40: #{cbr_forward.2} parent=27 // pred_fallthru
        _
    $region28: #{cbr_forward.2} parent=5 // pred_fallthru
      _
    %p932 = scmp.le.s32.totalorder 2, %s8
    // Predicated region
    $region41: #{cbr_forward.2} parent=5 // pred_check
      %p933 = pneg %p932
    $region42: #{cbr_forward.2} parent=5 // pred_check_branch
      %935 = sbr.rel (%p933) target = $region44
    $region43: #{cbr_forward.2} parent=5 // pred_region
      %s936 = ssub.s32 %s8, 2
    $region44: #{cbr_forward.2} parent=5 // pred_fallthru
      _
  $region6: #{cbr_forward.2} parent=0 // loop_footer
    %s12 = sadd.s32 1, %s8
  $region7: #{cbr_forward.2} parent=0 // loop_footer_branch
    %7 = sbr.rel target = $region3
  $region8: #{cbr_forward.2} parent=0 // loop_exit
    _

// kernel: cbr_forward.3
$region0: #{cbr_forward.3}
  #allocation0 [shape = 'u32[]', space=smem, size = 0x4, offset = 0x4, fixed_abs, tag = 'smem constant byte address 0x4 - core index']
  #allocation1 [shape = 'u32[72,128]{1,0:T(1,128)}', space=vmem, size = 0x9000, scoped, tag = 'internal scratch']
  %s0 = inlined_call_operand.vmem [shape: bf16[2,324,48], index: 0, kind: input, shape index: {}]
  %s1 = inlined_call_operand.vmem [shape: bf16[3,8,48], index: 1, kind: input, shape index: {}]
  %s2 = inlined_call_operand.vmem [shape: f32[8,1], index: 2, kind: input, shape index: {}]
  %s3 = inlined_call_operand.vmem [shape: f32[8,1], index: 3, kind: input, shape index: {}]
  %s4 = inlined_call_operand.vmem [shape: bf16[2,8,288], index: 4, kind: output, shape index: {}]
  %s5 = sld [smem:[#allocation0]]
  $region49: #{cbr_forward.3} parent=0
    _
  %s7 = ssub.s32 1, %s5
  %s8 = scalar_select 0, %s7, %s5
  loop: start=0, step=1, limit=4
  $region2: #{cbr_forward.3} parent=0 // loop_pre_header
    _
  $region3: #{cbr_forward.3} parent=0 // loop_header
    %s10 = sphi 0, %s14
    %p11 = scmp.ge.s32.totalorder %s10, 4
    %s20 = sphi 0, %s22
    %s23 = sphi 0, %s20
    %s24 = sphi 0, %s23
    %s40 = sphi 0, %s24
    %s44 = sphi 0, %s44
    %s46 = sphi 0, %s44
    %s47 = sphi 0, %s46
    %s61 = sphi 0, %s47
    %s65 = sphi 0, %s65
    %s67 = sphi 0, %s65
    %s68 = sphi 0, %s67
    %s82 = sphi 0, %s68
    %s86 = sphi 0, %s86
    %s88 = sphi 0, %s86
    %s89 = sphi 0, %s88
    %s103 = sphi 0, %s89
    %s109 = sphi 0, %s111
    %s112 = sphi 0, %s109
    %s113 = sphi 0, %s112
    %s129 = sphi 0, %s113
  $region4: #{cbr_forward.3} parent=0 // loop_header_branch
    %13 = sbr.rel (%p11) target = $region8
  $region5: #{cbr_forward.3} parent=0 // loop_body
    %s15 = ssub.s32 %s10, 1
    %s16 = ssub.s32 %s10, 2
    %s17 = sadd.s32 %s10, 1
    %s18 = ssub.s32 %s10, %s17
    %p19 = scmp.eq.s32.totalorder %s18, 0
    %s21 = sadd.s32 %s20, 1
    %s22 = scalar_select %p19, %s20, %s21
    %p25 = pneg %p19
    %p26 = scmp.eq.s32.totalorder %s10, 1
    %p27 = por %p25, %p26
    %p28 = scmp.ne.s32.totalorder %s20, %s23
    %p29 = scmp.eq.s32.totalorder %s10, 0
    %p30 = por %p28, %p29
    %p31 = scmp.ne.s32.totalorder %s20, %s23
    %p32 = scmp.eq.s32.totalorder %s15, 1
    %p33 = por %p31, %p32
    %p34 = scmp.ne.s32.totalorder %s23, %s24
    %p35 = scmp.eq.s32.totalorder %s15, 0
    %p36 = por %p34, %p35
    %p37 = scmp.ne.s32.totalorder %s23, %s24
    %p38 = scmp.eq.s32.totalorder %s16, 1
    %p39 = por %p37, %p38
    %p41 = scmp.ne.s32.totalorder %s24, %s40
    %p42 = scmp.eq.s32.totalorder %s16, 0
    %p43 = por %p41, %p42
    %s45 = sadd.s32 %s44, 1
    %p48 = scmp.eq.s32.totalorder %s10, 1
    %p49 = scmp.ne.s32.totalorder %s44, %s46
    %p50 = scmp.eq.s32.totalorder %s10, 0
    %p51 = por %p49, %p50
    %p52 = scmp.ne.s32.totalorder %s44, %s46
    %p53 = scmp.eq.s32.totalorder %s15, 1
    %p54 = por %p52, %p53
    %p55 = scmp.ne.s32.totalorder %s46, %s47
    %p56 = scmp.eq.s32.totalorder %s15, 0
    %p57 = por %p55, %p56
    %p58 = scmp.ne.s32.totalorder %s46, %s47
    %p59 = scmp.eq.s32.totalorder %s16, 1
    %p60 = por %p58, %p59
    %p62 = scmp.ne.s32.totalorder %s47, %s61
    %p63 = scmp.eq.s32.totalorder %s16, 0
    %p64 = por %p62, %p63
    %s66 = sadd.s32 %s65, 1
    %p69 = scmp.eq.s32.totalorder %s10, 1
    %p70 = scmp.ne.s32.totalorder %s65, %s67
    %p71 = scmp.eq.s32.totalorder %s10, 0
    %p72 = por %p70, %p71
    %p73 = scmp.ne.s32.totalorder %s65, %s67
    %p74 = scmp.eq.s32.totalorder %s15, 1
    %p75 = por %p73, %p74
    %p76 = scmp.ne.s32.totalorder %s67, %s68
    %p77 = scmp.eq.s32.totalorder %s15, 0
    %p78 = por %p76, %p77
    %p79 = scmp.ne.s32.totalorder %s67, %s68
    %p80 = scmp.eq.s32.totalorder %s16, 1
    %p81 = por %p79, %p80
    %p83 = scmp.ne.s32.totalorder %s68, %s82
    %p84 = scmp.eq.s32.totalorder %s16, 0
    %p85 = por %p83, %p84
    %s87 = sadd.s32 %s86, 1
    %p90 = scmp.eq.s32.totalorder %s10, 1
    %p91 = scmp.ne.s32.totalorder %s86, %s88
    %p92 = scmp.eq.s32.totalorder %s10, 0
    %p93 = por %p91, %p92
    %p94 = scmp.ne.s32.totalorder %s86, %s88
    %p95 = scmp.eq.s32.totalorder %s15, 1
    %p96 = por %p94, %p95
    %p97 = scmp.ne.s32.totalorder %s88, %s89
    %p98 = scmp.eq.s32.totalorder %s15, 0
    %p99 = por %p97, %p98
    %p100 = scmp.ne.s32.totalorder %s88, %s89
    %p101 = scmp.eq.s32.totalorder %s16, 1
    %p102 = por %p100, %p101
    %p104 = scmp.ne.s32.totalorder %s89, %s103
    %p105 = scmp.eq.s32.totalorder %s16, 0
    %p106 = por %p104, %p105
    %s107 = ssub.s32 %s10, %s17
    %p108 = scmp.eq.s32.totalorder %s107, 0
    %s110 = sadd.s32 %s109, 1
    %s111 = scalar_select %p108, %s109, %s110
    %p114 = pneg %p108
    %p115 = scmp.eq.s32.totalorder %s10, 1
    %p116 = por %p114, %p115
    %p117 = scmp.ne.s32.totalorder %s109, %s112
    %p118 = scmp.eq.s32.totalorder %s10, 0
    %p119 = por %p117, %p118
    %p120 = scmp.ne.s32.totalorder %s109, %s112
    %p121 = scmp.eq.s32.totalorder %s15, 1
    %p122 = por %p120, %p121
    %p123 = scmp.ne.s32.totalorder %s112, %s113
    %p124 = scmp.eq.s32.totalorder %s15, 0
    %p125 = por %p123, %p124
    %p126 = scmp.ne.s32.totalorder %s112, %s113
    %p127 = scmp.eq.s32.totalorder %s16, 1
    %p128 = por %p126, %p127
    %p130 = scmp.ne.s32.totalorder %s113, %s129
    %p131 = scmp.eq.s32.totalorder %s16, 0
    %p132 = por %p130, %p131
    %p133 = scmp.le.s32.totalorder 1, %s10
    %p134 = scmp.lt.s32.totalorder %s10, 3
    %p135 = pnand %p133, %p134
    %p136 = pneg %p135
    // Predicated region
    $region9: #{cbr_forward.3} parent=5 // pred_check
      _
    $region10: #{cbr_forward.3} parent=5 // pred_check_branch
      %138 = sbr.rel (%p135) target = $region12
    $region11: #{cbr_forward.3} parent=5 // pred_region
      %s139 = ssub.s32 %s10, 1
      // Predicated region
      $region13: #{cbr_forward.3} parent=11 // pred_check
        %p140 = pneg %p57
      $region14: #{cbr_forward.3} parent=11 // pred_check_branch
        %142 = sbr.rel (%p140) target = $region16
      $region15: #{cbr_forward.3} parent=11 // pred_region
        _
      $region16: #{cbr_forward.3} parent=11 // pred_fallthru
        _
      // Predicated region
      $region17: #{cbr_forward.3} parent=11 // pred_check
        %p143 = pneg %p78
      $region18: #{cbr_forward.3} parent=11 // pred_check_branch
        %145 = sbr.rel (%p143) target = $region20
      $region19: #{cbr_forward.3} parent=11 // pred_region
        _
      $region20: #{cbr_forward.3} parent=11 // pred_fallthru
        _
      // Predicated region
      $region21: #{cbr_forward.3} parent=11 // pred_check
        %p146 = pneg %p99
      $region22: #{cbr_forward.3} parent=11 // pred_check_branch
        %148 = sbr.rel (%p146) target = $region24
      $region23: #{cbr_forward.3} parent=11 // pred_region
        _
      $region24: #{cbr_forward.3} parent=11 // pred_fallthru
        _
    $region12: #{cbr_forward.3} parent=5 // pred_fallthru
      _
    %p149 = scmp.lt.s32.totalorder %s10, 2
    // Predicated region
    $region25: #{cbr_forward.3} parent=5 // pred_check
      %p150 = pneg %p149
    $region26: #{cbr_forward.3} parent=5 // pred_check_branch
      %152 = sbr.rel (%p150) target = $region28
    $region27: #{cbr_forward.3} parent=5 // pred_region
      // Predicated region
      $region29: #{cbr_forward.3} parent=27 // pred_check
        %p153 = pneg %p30
      $region30: #{cbr_forward.3} parent=27 // pred_check_branch
        %155 = sbr.rel (%p153) target = $region32
      $region31: #{cbr_forward.3} parent=27 // pred_region
        %p156 = scmp.lt.s32.totalorder %s10, 1
        %s157 = scalar_select %p156, %s10, 1
        %s158 = smul.addr %s157, 41
        %s159 = smul.addr %s158, 4
        %s160 = scalar_lea.vmem %s0, %s159
      $region32: #{cbr_forward.3} parent=27 // pred_fallthru
        _
    $region28: #{cbr_forward.3} parent=5 // pred_fallthru
      _
    %p161 = scmp.le.s32.totalorder 1, %s10
    %p162 = scmp.lt.s32.totalorder %s10, 3
    %p163 = pnand %p161, %p162
    %p164 = pneg %p163
    // Predicated region
    $region33: #{cbr_forward.3} parent=5 // pred_check
      _
    $region34: #{cbr_forward.3} parent=5 // pred_check_branch
      %166 = sbr.rel (%p163) target = $region36
    $region35: #{cbr_forward.3} parent=5 // pred_region
      %s167 = ssub.s32 %s10, 1
      %p168 = scmp.lt.s32.totalorder %s15, 1
      %s169 = scalar_select %p168, %s15, 1
      %s170 = smul.addr %s169, 41
      %s171 = smul.addr %s170, 4
      %s172 = scalar_lea.vmem %s0, %s171
      %p173 = pneg %p36
      %p174 = pneg %p33
      %p175 = pneg %p57
      %p176 = pneg %p54
      %p177 = pneg %p78
      %p178 = pneg %p75
      %p179 = pneg %p99
      %p180 = pneg %p96
      %p181 = pneg %p125
      %p182 = pneg %p122
      %p183 = scmp.lt.s32.totalorder %s15, 1
      %s184 = scalar_select %p183, %s15, 1
      %s185 = smul.addr %s184, 3
      %s186 = smul.addr %s185, 4
      %s187 = scalar_lea.vmem %s4, %s186
      %p188 = scmp.lt.s32.totalorder %s15, 1
      %s189 = scalar_select %p188, %s15, 1
      %s190 = smul.addr %s189, 41
      %s191 = smul.addr %s190, 4
      %s192 = scalar_lea.vmem %s0, %s191
      %p193 = scmp.lt.s32.totalorder %s15, 1
      %s194 = scalar_select %p193, %s15, 1
      %s195 = smul.addr %s194, 3
      %s196 = smul.addr %s195, 4
      %s197 = scalar_lea.vmem %s4, %s196
      %v199 = vld [vmem:[%s192] sm:$0xf]
      %v200 = vld [vmem:[%s192 + $0x4] sm:$0xf]
      %v201 = vld [vmem:[%s192 + $0x8] sm:$0xf]
      %v202 = vld [vmem:[%s192 + $0xc] sm:$0xf]
      %v203 = vld [vmem:[%s192 + $0x10] sm:$0xf]
      %v204 = vld [vmem:[%s192 + $0x14] sm:$0xf]
      %v205 = vld [vmem:[%s192 + $0x18] sm:$0xf]
      %v206 = vld [vmem:[%s192 + $0x1c] sm:$0xf]
      %v207 = vld [vmem:[%s192 + $0x20] sm:$0xf]
      %v208 = vld [vmem:[%s192 + $0x24] sm:$0xf]
      %v209 = vld [vmem:[%s192 + $0x28] sm:$0xf]
      %v210 = vld [vmem:[%s192 + $0x2c] sm:$0xf]
      %v211 = vld [vmem:[%s192 + $0x30] sm:$0xf]
      %v212 = vld [vmem:[%s192 + $0x34] sm:$0xf]
      %v213 = vld [vmem:[%s192 + $0x38] sm:$0xf]
      %v214 = vld [vmem:[%s192 + $0x3c] sm:$0xf]
      %v215 = vld [vmem:[%s192 + $0x40] sm:$0xf]
      %v216 = vld [vmem:[%s192 + $0x44] sm:$0xf]
      %v217 = vld [vmem:[%s192 + $0x48] sm:$0xf]
      %v218 = vld [vmem:[%s192 + $0x4c] sm:$0xf]
      %v219 = vld [vmem:[%s192 + $0x50] sm:$0xf]
      %v220 = vld [vmem:[%s192 + $0x54] sm:$0xf]
      %v221 = vld [vmem:[%s192 + $0x58] sm:$0xf]
      %v222 = vld [vmem:[%s192 + $0x5c] sm:$0xf]
      %v223 = vld [vmem:[%s192 + $0x60] sm:$0xf]
      %v224 = vld [vmem:[%s192 + $0x64] sm:$0xf]
      %v225 = vld [vmem:[%s192 + $0x68] sm:$0xf]
      %v226 = vld [vmem:[%s192 + $0x6c] sm:$0xf]
      %v227 = vld [vmem:[%s192 + $0x70] sm:$0xf]
      %v228 = vld [vmem:[%s192 + $0x74] sm:$0xf]
      %v229 = vld [vmem:[%s192 + $0x78] sm:$0xf]
      %v230 = vld [vmem:[%s192 + $0x7c] sm:$0xf]
      %v231 = vld [vmem:[%s192 + $0x80] sm:$0xf]
      %v232 = vld [vmem:[%s192 + $0x84] sm:$0xf]
      %v233 = vld [vmem:[%s192 + $0x88] sm:$0xf]
      %v234 = vld [vmem:[%s192 + $0x8c] sm:$0xf]
      %v235 = vld [vmem:[%s1] sm:$0xf]
      %v236 = vld [vmem:[%s192 + $0x8] sm:$0xe]
      %v237 = vld [vmem:[%s192 + $0x90] sm:$0xf]
      %v238 = vld [vmem:[%s192 + $0x94] sm:$0xf]
      %v239 = vld [vmem:[%s192 + $0x98] sm:$0x1]
      %s240 = scalar_lea.vmem %s1, 4
      %v241 = vld [vmem:[%s240] sm:$0xf]
      %v279 = vunpack.c.l.b16 %v236
      %v280 = vunpack.c.l.b16 %v202
      %v281 = vunpack.c.l.b16 %v203
      %v282 = vunpack.c.l.b16 %v204
      %v283 = vunpack.c.l.b16 %v205
      %v284 = vunpack.c.l.b16 %v206
      %v285 = vunpack.c.l.b16 %v207
      %v286 = vunpack.c.l.b16 %v208
      %v287 = vunpack.c.l.b16 %v209
      %v288 = vunpack.c.l.b16 %v210
      %v289 = vunpack.c.l.b16 %v211
      %v290 = vunpack.c.l.b16 %v212
      %v291 = vunpack.c.l.b16 %v213
      %v292 = vunpack.c.l.b16 %v214
      %v293 = vunpack.c.l.b16 %v215
      %v294 = vunpack.c.l.b16 %v216
      %v295 = vunpack.c.l.b16 %v217
      %v296 = vunpack.c.l.b16 %v218
      %v297 = vunpack.c.l.b16 %v219
      %v298 = vunpack.c.l.b16 %v220
      %v299 = vunpack.c.l.b16 %v221
      %v300 = vunpack.c.l.b16 %v222
      %v301 = vunpack.c.l.b16 %v223
      %v302 = vunpack.c.l.b16 %v224
      %v303 = vunpack.c.l.b16 %v225
      %v304 = vunpack.c.l.b16 %v226
      %v305 = vunpack.c.l.b16 %v227
      %v306 = vunpack.c.l.b16 %v228
      %v307 = vunpack.c.l.b16 %v229
      %v308 = vunpack.c.l.b16 %v230
      %v309 = vunpack.c.l.b16 %v231
      %v310 = vunpack.c.l.b16 %v232
      %v311 = vunpack.c.l.b16 %v233
      %v312 = vunpack.c.l.b16 %v234
      %v313 = vunpack.c.l.b16 %v237
      %v314 = vunpack.c.l.b16 %v238
      %v315 = vunpack.c.l.b16 %v239
      %v316 = vpack.c.b16 %v280, %v279
      %v317 = vpack.c.b16 %v282, %v281
      %v318 = vpack.c.b16 %v284, %v283
      %v319 = vpack.c.b16 %v286, %v285
      %v320 = vpack.c.b16 %v288, %v287
      %v321 = vpack.c.b16 %v290, %v289
      %v322 = vpack.c.b16 %v292, %v291
      %v323 = vpack.c.b16 %v294, %v293
      %v324 = vpack.c.b16 %v296, %v295
      %v325 = vpack.c.b16 %v298, %v297
      %v326 = vpack.c.b16 %v300, %v299
      %v327 = vpack.c.b16 %v302, %v301
      %v328 = vpack.c.b16 %v304, %v303
      %v329 = vpack.c.b16 %v306, %v305
      %v330 = vpack.c.b16 %v308, %v307
      %v331 = vpack.c.b16 %v310, %v309
      %v332 = vpack.c.b16 %v312, %v311
      %v333 = vpack.c.b16 %v314, %v313
      %v334 = vpack.c.b16 %v315, %v315
      %vm335 = vcmask 1046528
      %v336 = vrot.slane %v316, 1
      %v337 = vrot.slane %v317, 1
      %v338 = vsel %vm335, %v336, %v337
      %v339 = vrot.slane %v318, 1
      %v340 = vsel %vm335, %v337, %v339
      %v341 = vrot.slane %v319, 1
      %v342 = vsel %vm335, %v339, %v341
      %v343 = vrot.slane %v320, 1
      %v344 = vsel %vm335, %v341, %v343
      %v345 = vrot.slane %v321, 1
      %v346 = vsel %vm335, %v343, %v345
      %v347 = vrot.slane %v322, 1
      %v348 = vsel %vm335, %v345, %v347
      %v349 = vrot.slane %v323, 1
      %v350 = vsel %vm335, %v347, %v349
      %v351 = vrot.slane %v324, 1
      %v352 = vsel %vm335, %v349, %v351
      %v353 = vrot.slane %v325, 1
      %v354 = vsel %vm335, %v351, %v353
      %v355 = vrot.slane %v326, 1
      %v356 = vsel %vm335, %v353, %v355
      %v357 = vrot.slane %v327, 1
      %v358 = vsel %vm335, %v355, %v357
      %v359 = vrot.slane %v328, 1
      %v360 = vsel %vm335, %v357, %v359
      %v361 = vrot.slane %v329, 1
      %v362 = vsel %vm335, %v359, %v361
      %v363 = vrot.slane %v330, 1
      %v364 = vsel %vm335, %v361, %v363
      %v365 = vrot.slane %v331, 1
      %v366 = vsel %vm335, %v363, %v365
      %v367 = vrot.slane %v332, 1
      %v368 = vsel %vm335, %v365, %v367
      %v369 = vrot.slane %v333, 1
      %v370 = vsel %vm335, %v367, %v369
      %v371 = vrot.slane %v334, 1
      %v372 = vsel %vm335, %v369, %v371
      %vm373 = vcmask 392192
      %v375 = vsel %vm373, %v241, 0
      %v378 = vsel %vm373, %v338, 0
      %v381 = vsel %vm373, %v340, 0
      %v384 = vsel %vm373, %v342, 0
      %v387 = vsel %vm373, %v344, 0
      %v390 = vsel %vm373, %v346, 0
      %v393 = vsel %vm373, %v348, 0
      %v396 = vsel %vm373, %v350, 0
      %v399 = vsel %vm373, %v352, 0
      %v402 = vsel %vm373, %v354, 0
      %v405 = vsel %vm373, %v356, 0
      %v408 = vsel %vm373, %v358, 0
      %v411 = vsel %vm373, %v360, 0
      %v414 = vsel %vm373, %v362, 0
      %v417 = vsel %vm373, %v364, 0
      %v420 = vsel %vm373, %v366, 0
      %v423 = vsel %vm373, %v368, 0
      %v426 = vsel %vm373, %v370, 0
      %v429 = vsel %vm373, %v372, 0
      %431 = vmatpush.bf16.xpose.msra.mxu0 %v399
      %432 = vmatpush.bf16.xpose.msra.mxu0 %v396
      %433 = vmatpush.bf16.xpose.msra.mxu0 %v393
      %434 = vmatpush.bf16.xpose.msra.mxu0 %v390
      %435 = vmatpush.bf16.xpose.msra.mxu0 %v387
      %436 = vmatpush.bf16.xpose.msra.mxu0 %v384
      %437 = vmatpush.bf16.xpose.msra.mxu0 %v381
      %438 = vmatpush.bf16.xpose.msra.mxu0 %v378
      %439 = vmatmul.bf16.gmra.mxu0 %v375
      %v440 = vpop.f32.mrf.mxu0
      %v441 = vadd.f32 0.0, %v440
      %v442 = vpop.f32.mrf.mxu0
      %443 = vdwg.mxu0
      %444 = vmatpush.bf16.xpose.msra.mxu0 %v423
      %445 = vmatpush.bf16.xpose.msra.mxu0 %v420
      %446 = vmatpush.bf16.xpose.msra.mxu0 %v417
      %447 = vmatpush.bf16.xpose.msra.mxu0 %v414
      %448 = vmatpush.bf16.xpose.msra.mxu0 %v411
      %449 = vmatpush.bf16.xpose.msra.mxu0 %v408
      %450 = vmatpush.bf16.xpose.msra.mxu0 %v405
      %451 = vmatpush.bf16.xpose.msra.mxu0 %v402
      %452 = vmatmul.bf16.gmra.mxu0 %v375
      %v453 = vpop.f32.mrf.mxu0
      %v454 = vadd.f32 0.0, %v453
      %v455 = vpop.f32.mrf.mxu0
      %456 = vdwg.mxu0
      %457 = vmatpush.bf16.xpose.msra.mxu0 0
      %458 = vmatpush.bf16.xpose.msra.mxu0 0
      %459 = vmatpush.bf16.xpose.msra.mxu0 0
      %460 = vmatpush.bf16.xpose.msra.mxu0 0
      %461 = vmatpush.bf16.xpose.msra.mxu0 0
      %462 = vmatpush.bf16.xpose.msra.mxu0 0
      %463 = vmatpush.bf16.xpose.msra.mxu0 %v429
      %464 = vmatpush.bf16.xpose.msra.mxu0 %v426
      %465 = vmatmul.bf16.gmra.mxu0 %v375
      %v466 = vpop.f32.mrf.mxu0
      %v467 = vadd.f32 0.0, %v466
      %v468 = vpop.f32.mrf.mxu0
      %469 = vdwg.mxu0
      %v473 = vunpack.c.l.b16 %v199
      %v474 = vunpack.c.l.b16 %v200
      %v475 = vunpack.c.l.b16 %v201
      %v476 = vpack.c.b16 %v474, %v473
      %v477 = vpack.c.b16 %v280, %v475
      %v479 = vsel %vm373, %v235, 0
      %v482 = vsel %vm373, %v476, 0
      %v485 = vsel %vm373, %v477, 0
      %v488 = vsel %vm373, %v317, 0
      %v491 = vsel %vm373, %v318, 0
      %v494 = vsel %vm373, %v319, 0
      %v497 = vsel %vm373, %v320, 0
      %v500 = vsel %vm373, %v321, 0
      %v503 = vsel %vm373, %v322, 0
      %v506 = vsel %vm373, %v323, 0
      %v509 = vsel %vm373, %v324, 0
      %v512 = vsel %vm373, %v325, 0
      %v515 = vsel %vm373, %v326, 0
      %v518 = vsel %vm373, %v327, 0
      %v521 = vsel %vm373, %v328, 0
      %v524 = vsel %vm373, %v329, 0
      %v527 = vsel %vm373, %v330, 0
      %v530 = vsel %vm373, %v331, 0
      %v533 = vsel %vm373, %v332, 0
      %535 = vmatpush.bf16.xpose.msra.mxu0 %v503
      %536 = vmatpush.bf16.xpose.msra.mxu0 %v500
      %537 = vmatpush.bf16.xpose.msra.mxu0 %v497
      %538 = vmatpush.bf16.xpose.msra.mxu0 %v494
      %539 = vmatpush.bf16.xpose.msra.mxu0 %v491
      %540 = vmatpush.bf16.xpose.msra.mxu0 %v488
      %541 = vmatpush.bf16.xpose.msra.mxu0 %v485
      %542 = vmatpush.bf16.xpose.msra.mxu0 %v482
      %543 = vmatmul.bf16.gmra.mxu0 %v479
      %v544 = vpop.f32.mrf.mxu0
      %v545 = vadd.f32 %v441, %v544
      %v546 = vpop.f32.mrf.mxu0
      %547 = vdwg.mxu0
      %548 = vmatpush.bf16.xpose.msra.mxu0 %v527
      %549 = vmatpush.bf16.xpose.msra.mxu0 %v524
      %550 = vmatpush.bf16.xpose.msra.mxu0 %v521
      %551 = vmatpush.bf16.xpose.msra.mxu0 %v518
      %552 = vmatpush.bf16.xpose.msra.mxu0 %v515
      %553 = vmatpush.bf16.xpose.msra.mxu0 %v512
      %554 = vmatpush.bf16.xpose.msra.mxu0 %v509
      %555 = vmatpush.bf16.xpose.msra.mxu0 %v506
      %556 = vmatmul.bf16.gmra.mxu0 %v479
      %v557 = vpop.f32.mrf.mxu0
      %v558 = vadd.f32 %v454, %v557
      %v559 = vpop.f32.mrf.mxu0
      %560 = vdwg.mxu0
      %561 = vmatpush.bf16.xpose.msra.mxu0 0
      %562 = vmatpush.bf16.xpose.msra.mxu0 0
      %563 = vmatpush.bf16.xpose.msra.mxu0 0
      %564 = vmatpush.bf16.xpose.msra.mxu0 0
      %565 = vmatpush.bf16.xpose.msra.mxu0 0
      %566 = vmatpush.bf16.xpose.msra.mxu0 0
      %567 = vmatpush.bf16.xpose.msra.mxu0 %v533
      %568 = vmatpush.bf16.xpose.msra.mxu0 %v530
      %569 = vmatmul.bf16.gmra.mxu0 %v479
      %v570 = vpop.f32.mrf.mxu0
      %v571 = vadd.f32 %v467, %v570
      %v572 = vpop.f32.mrf.mxu0
      %573 = vdwg.mxu0
      %v574 = vld [vmem:[%s192 + $0x10] sm:$0xc]
      %v575 = vld [vmem:[%s192 + $0x14] sm:$0xf]
      %v576 = vld [vmem:[%s192 + $0x18] sm:$0xf]
      %v577 = vld [vmem:[%s192 + $0x1c] sm:$0xf]
      %v578 = vld [vmem:[%s192 + $0x20] sm:$0xf]
      %v579 = vld [vmem:[%s192 + $0x24] sm:$0xf]
      %v580 = vld [vmem:[%s192 + $0x28] sm:$0xf]
      %v581 = vld [vmem:[%s192 + $0x2c] sm:$0xf]
      %v582 = vld [vmem:[%s192 + $0x30] sm:$0xf]
      %v583 = vld [vmem:[%s192 + $0x34] sm:$0xf]
      %v584 = vld [vmem:[%s192 + $0x38] sm:$0xf]
      %v585 = vld [vmem:[%s192 + $0x3c] sm:$0xf]
      %v586 = vld [vmem:[%s192 + $0x40] sm:$0xf]
      %v587 = vld [vmem:[%s192 + $0x44] sm:$0xf]
      %v588 = vld [vmem:[%s192 + $0x48] sm:$0xf]
      %v589 = vld [vmem:[%s192 + $0x4c] sm:$0xf]
      %v590 = vld [vmem:[%s192 + $0x50] sm:$0xf]
      %v591 = vld [vmem:[%s192 + $0x54] sm:$0xf]
      %v592 = vld [vmem:[%s192 + $0x58] sm:$0xf]
      %v593 = vld [vmem:[%s192 + $0x5c] sm:$0xf]
      %v594 = vld [vmem:[%s192 + $0x60] sm:$0xf]
      %v595 = vld [vmem:[%s192 + $0x64] sm:$0xf]
      %v596 = vld [vmem:[%s192 + $0x68] sm:$0xf]
      %v597 = vld [vmem:[%s192 + $0x6c] sm:$0xf]
      %v598 = vld [vmem:[%s192 + $0x70] sm:$0xf]
      %v599 = vld [vmem:[%s192 + $0x74] sm:$0xf]
      %v600 = vld [vmem:[%s192 + $0x78] sm:$0xf]
      %v601 = vld [vmem:[%s192 + $0x7c] sm:$0xf]
      %v602 = vld [vmem:[%s192 + $0x80] sm:$0xf]
      %v603 = vld [vmem:[%s192 + $0x84] sm:$0xf]
      %v604 = vld [vmem:[%s192 + $0x88] sm:$0xf]
      %v605 = vld [vmem:[%s192 + $0x8c] sm:$0xf]
      %v606 = vld [vmem:[%s192 + $0x90] sm:$0xf]
      %v607 = vld [vmem:[%s192 + $0x94] sm:$0xf]
      %v608 = vld [vmem:[%s192 + $0x98] sm:$0xf]
      %v609 = vld [vmem:[%s192 + $0x9c] sm:$0xf]
      %v610 = vld [vmem:[%s192 + $0xa0] sm:$0x3]
      %s611 = scalar_lea.vmem %s1, 8
      %v612 = vld [vmem:[%s611] sm:$0xf]
      %v650 = vunpack.c.l.b16 %v574
      %v651 = vunpack.c.l.b16 %v575
      %v652 = vunpack.c.l.b16 %v576
      %v653 = vunpack.c.l.b16 %v577
      %v654 = vunpack.c.l.b16 %v578
      %v655 = vunpack.c.l.b16 %v579
      %v656 = vunpack.c.l.b16 %v580
      %v657 = vunpack.c.l.b16 %v581
      %v658 = vunpack.c.l.b16 %v582
      %v659 = vunpack.c.l.b16 %v583
      %v660 = vunpack.c.l.b16 %v584
      %v661 = vunpack.c.l.b16 %v585
      %v662 = vunpack.c.l.b16 %v586
      %v663 = vunpack.c.l.b16 %v587
      %v664 = vunpack.c.l.b16 %v588
      %v665 = vunpack.c.l.b16 %v589
      %v666 = vunpack.c.l.b16 %v590
      %v667 = vunpack.c.l.b16 %v591
      %v668 = vunpack.c.l.b16 %v592
      %v669 = vunpack.c.l.b16 %v593
      %v670 = vunpack.c.l.b16 %v594
      %v671 = vunpack.c.l.b16 %v595
      %v672 = vunpack.c.l.b16 %v596
      %v673 = vunpack.c.l.b16 %v597
      %v674 = vunpack.c.l.b16 %v598
      %v675 = vunpack.c.l.b16 %v599
      %v676 = vunpack.c.l.b16 %v600
      %v677 = vunpack.c.l.b16 %v601
      %v678 = vunpack.c.l.b16 %v602
      %v679 = vunpack.c.l.b16 %v603
      %v680 = vunpack.c.l.b16 %v604
      %v681 = vunpack.c.l.b16 %v605
      %v682 = vunpack.c.l.b16 %v606
      %v683 = vunpack.c.l.b16 %v607
      %v684 = vunpack.c.l.b16 %v608
      %v685 = vunpack.c.l.b16 %v609
      %v686 = vunpack.c.l.b16 %v610
      %v687 = vpack.c.b16 %v651, %v650
      %v688 = vpack.c.b16 %v653, %v652
      %v689 = vpack.c.b16 %v655, %v654
      %v690 = vpack.c.b16 %v657, %v656
      %v691 = vpack.c.b16 %v659, %v658
      %v692 = vpack.c.b16 %v661, %v660
      %v693 = vpack.c.b16 %v663, %v662
      %v694 = vpack.c.b16 %v665, %v664
      %v695 = vpack.c.b16 %v667, %v666
      %v696 = vpack.c.b16 %v669, %v668
      %v697 = vpack.c.b16 %v671, %v670
      %v698 = vpack.c.b16 %v673, %v672
      %v699 = vpack.c.b16 %v675, %v674
      %v700 = vpack.c.b16 %v677, %v676
      %v701 = vpack.c.b16 %v679, %v678
      %v702 = vpack.c.b16 %v681, %v680
      %v703 = vpack.c.b16 %v683, %v682
      %v704 = vpack.c.b16 %v685, %v684
      %v705 = vpack.c.b16 %v686, %v686
      %vm706 = vcmask 1045504
      %v707 = vrot.slane %v687, 2
      %v708 = vrot.slane %v688, 2
      %v709 = vsel %vm706, %v707, %v708
      %v710 = vrot.slane %v689, 2
      %v711 = vsel %vm706, %v708, %v710
      %v712 = vrot.slane %v690, 2
      %v713 = vsel %vm706, %v710, %v712
      %v714 = vrot.slane %v691, 2
      %v715 = vsel %vm706, %v712, %v714
      %v716 = vrot.slane %v692, 2
      %v717 = vsel %vm706, %v714, %v716
      %v718 = vrot.slane %v693, 2
      %v719 = vsel %vm706, %v716, %v718
      %v720 = vrot.slane %v694, 2
      %v721 = vsel %vm706, %v718, %v720
      %v722 = vrot.slane %v695, 2
      %v723 = vsel %vm706, %v720, %v722
      %v724 = vrot.slane %v696, 2
      %v725 = vsel %vm706, %v722, %v724
      %v726 = vrot.slane %v697, 2
      %v727 = vsel %vm706, %v724, %v726
      %v728 = vrot.slane %v698, 2
      %v729 = vsel %vm706, %v726, %v728
      %v730 = vrot.slane %v699, 2
      %v731 = vsel %vm706, %v728, %v730
      %v732 = vrot.slane %v700, 2
      %v733 = vsel %vm706, %v730, %v732
      %v734 = vrot.slane %v701, 2
      %v735 = vsel %vm706, %v732, %v734
      %v736 = vrot.slane %v702, 2
      %v737 = vsel %vm706, %v734, %v736
      %v738 = vrot.slane %v703, 2
      %v739 = vsel %vm706, %v736, %v738
      %v740 = vrot.slane %v704, 2
      %v741 = vsel %vm706, %v738, %v740
      %v742 = vrot.slane %v705, 2
      %v743 = vsel %vm706, %v740, %v742
      %v745 = vsel %vm373, %v612, 0
      %v748 = vsel %vm373, %v709, 0
      %v751 = vsel %vm373, %v711, 0
      %v754 = vsel %vm373, %v713, 0
      %v757 = vsel %vm373, %v715, 0
      %v760 = vsel %vm373, %v717, 0
      %v763 = vsel %vm373, %v719, 0
      %v766 = vsel %vm373, %v721, 0
      %v769 = vsel %vm373, %v723, 0
      %v772 = vsel %vm373, %v725, 0
      %v775 = vsel %vm373, %v727, 0
      %v778 = vsel %vm373, %v729, 0
      %v781 = vsel %vm373, %v731, 0
      %v784 = vsel %vm373, %v733, 0
      %v787 = vsel %vm373, %v735, 0
      %v790 = vsel %vm373, %v737, 0
      %v793 = vsel %vm373, %v739, 0
      %v796 = vsel %vm373, %v741, 0
      %v799 = vsel %vm373, %v743, 0
      %801 = vmatpush.bf16.xpose.msra.mxu0 %v769
      %802 = vmatpush.bf16.xpose.msra.mxu0 %v766
      %803 = vmatpush.bf16.xpose.msra.mxu0 %v763
      %804 = vmatpush.bf16.xpose.msra.mxu0 %v760
      %805 = vmatpush.bf16.xpose.msra.mxu0 %v757
      %806 = vmatpush.bf16.xpose.msra.mxu0 %v754
      %807 = vmatpush.bf16.xpose.msra.mxu0 %v751
      %808 = vmatpush.bf16.xpose.msra.mxu0 %v748
      %809 = vmatmul.bf16.gmra.mxu0 %v745
      %v810 = vpop.f32.mrf.mxu0
      %v811 = vadd.f32 0.0, %v810
      %v812 = vpop.f32.mrf.mxu0
      %813 = vdwg.mxu0
      %814 = vmatpush.bf16.xpose.msra.mxu0 %v793
      %815 = vmatpush.bf16.xpose.msra.mxu0 %v790
      %816 = vmatpush.bf16.xpose.msra.mxu0 %v787
      %817 = vmatpush.bf16.xpose.msra.mxu0 %v784
      %818 = vmatpush.bf16.xpose.msra.mxu0 %v781
      %819 = vmatpush.bf16.xpose.msra.mxu0 %v778
      %820 = vmatpush.bf16.xpose.msra.mxu0 %v775
      %821 = vmatpush.bf16.xpose.msra.mxu0 %v772
      %822 = vmatmul.bf16.gmra.mxu0 %v745
      %v823 = vpop.f32.mrf.mxu0
      %v824 = vadd.f32 0.0, %v823
      %v825 = vpop.f32.mrf.mxu0
      %826 = vdwg.mxu0
      %827 = vmatpush.bf16.xpose.msra.mxu0 0
      %828 = vmatpush.bf16.xpose.msra.mxu0 0
      %829 = vmatpush.bf16.xpose.msra.mxu0 0
      %830 = vmatpush.bf16.xpose.msra.mxu0 0
      %831 = vmatpush.bf16.xpose.msra.mxu0 0
      %832 = vmatpush.bf16.xpose.msra.mxu0 0
      %833 = vmatpush.bf16.xpose.msra.mxu0 %v799
      %834 = vmatpush.bf16.xpose.msra.mxu0 %v796
      %835 = vmatmul.bf16.gmra.mxu0 %v745
      %v836 = vpop.f32.mrf.mxu0
      %v837 = vadd.f32 0.0, %v836
      %v838 = vpop.f32.mrf.mxu0
      %839 = vdwg.mxu0
      %v840 = vadd.f32 %v545, %v811
      %v841 = vadd.f32 %v558, %v824
      %v842 = vadd.f32 %v571, %v837
      %v843 = vld [vmem:[%s2] sm:$0xff]
      %845 = vset.pattern.permute.xlu0 0
      %846 = vperm.xlu0 %845, %v843
      %v847 = vpop.permute.xlu0 %846
      %v849 = vmul.f32 %v840, %v847
      %v850 = vmul.f32 %v841, %v847
      %v851 = vmul.f32 %v842, %v847
      %v852 = vld [vmem:[%s3] sm:$0xff]
      %854 = vset.pattern.permute.xlu0 0
      %855 = vperm.xlu0 %854, %v852
      %v856 = vpop.permute.xlu0 %855
      %v858 = vadd.f32 %v849, %v856
      %v859 = vadd.f32 %v850, %v856
      %v860 = vadd.f32 %v851, %v856
      %v861 = vmul.f32 %v858, 0.5
      %v862 = vmul.f32 %v859, 0.5
      %v863 = vmul.f32 %v860, 0.5
      %v864 = vmul.f32 %v858, 0.70710677
      %v865 = vmul.f32 %v859, 0.70710677
      %v866 = vmul.f32 %v860, 0.70710677
      %vm867 = vcmp.ge.f32.partialorder %v864, 0.0
      %vm868 = vcmp.ge.f32.partialorder %v865, 0.0
      %vm869 = vcmp.ge.f32.partialorder %v866, 0.0
      %v870 = vsel %vm867, 1.0, -1.0
      %v871 = vsel %vm868, 1.0, -1.0
      %v872 = vsel %vm869, 1.0, -1.0
      %v873 = vand.u32 2147483647, %v864
      %v874 = vand.u32 2147483647, %v865
      %v875 = vand.u32 2147483647, %v866
      %v876 = vmul.f32 %v873, 0.3275911
      %v877 = vmul.f32 %v874, 0.3275911
      %v878 = vmul.f32 %v875, 0.3275911
      %v879 = vadd.f32 %v876, 1.0
      %v880 = vadd.f32 %v877, 1.0
      %v881 = vadd.f32 %v878, 1.0
      %v882 = vrcp.pop %v879
      %v883 = vrcp.pop %v880
      %v884 = vrcp.pop %v881
      %v885 = vmul.f32 %v882, 1.0614054
      %v886 = vmul.f32 %v883, 1.0614054
      %v887 = vmul.f32 %v884, 1.0614054
      %v888 = vadd.f32 %v885, -1.4531521
      %v889 = vadd.f32 %v886, -1.4531521
      %v890 = vadd.f32 %v887, -1.4531521
      %v891 = vmul.f32 %v888, %v882
      %v892 = vmul.f32 %v889, %v883
      %v893 = vmul.f32 %v890, %v884
      %v894 = vadd.f32 %v891, 1.4214138
      %v895 = vadd.f32 %v892, 1.4214138
      %v896 = vadd.f32 %v893, 1.4214138
      %v897 = vmul.f32 %v894, %v882
      %v898 = vmul.f32 %v895, %v883
      %v899 = vmul.f32 %v896, %v884
      %v900 = vadd.f32 %v897, -0.28449672
      %v901 = vadd.f32 %v898, -0.28449672
      %v902 = vadd.f32 %v899, -0.28449672
      %v903 = vmul.f32 %v900, %v882
      %v904 = vmul.f32 %v901, %v883
      %v905 = vmul.f32 %v902, %v884
      %v906 = vadd.f32 %v903, 0.2548296
      %v907 = vadd.f32 %v904, 0.2548296
      %v908 = vadd.f32 %v905, 0.2548296
      %v909 = vmul.f32 %v906, %v882
      %v910 = vmul.f32 %v907, %v883
      %v911 = vmul.f32 %v908, %v884
      %v912 = vsub.f32 0.0, %v873
      %v913 = vsub.f32 0.0, %v874
      %v914 = vsub.f32 0.0, %v875
      %v915 = vmul.f32 %v912, %v873
      %v916 = vmul.f32 %v913, %v874
      %v917 = vmul.f32 %v914, %v875
      %v918 = vmul.f32 %v915, 1.442695
      %v919 = vpow.pop %v918
      %v920 = vmul.f32 %v916, 1.442695
      %v921 = vpow.pop %v920
      %v922 = vmul.f32 %v917, 1.442695
      %v923 = vpow.pop %v922
      %v924 = vmul.f32 %v909, %v919
      %v925 = vmul.f32 %v910, %v921
      %v926 = vmul.f32 %v911, %v923
      %v927 = vsub.f32 1.0, %v924
      %v928 = vsub.f32 1.0, %v925
      %v929 = vsub.f32 1.0, %v926
      %v930 = vmul.f32 %v870, %v927
      %v931 = vmul.f32 %v871, %v928
      %v932 = vmul.f32 %v872, %v929
      %v933 = vadd.f32 %v930, 1.0
      %v934 = vadd.f32 %v931, 1.0
      %v935 = vadd.f32 %v932, 1.0
      %v936 = vmul.f32 %v861, %v933
      %v937 = vmul.f32 %v862, %v934
      %v938 = vmul.f32 %v863, %v935
      %v939 = vpack.c.bf16 %v937, %v936
      %v940 = vpack.c.bf16 %v938, %v938
      %941 = vst [vmem:[%s197] sm:$0xff] %v939
      %vm942 = vcmask 257024
      %943 = vst.msk [vmem:[%s197 + $0x8] sm:$0xf] %vm942, %v940
      %p944 = scmp.lt.s32.totalorder %s15, 1
      %s945 = scalar_select %p944, %s15, 1
      %s946 = smul.addr %s945, 3
      %s947 = smul.addr %s946, 4
      %s948 = scalar_lea.vmem %s4, %s947
      // Predicated region
      $region37: #{cbr_forward.3} parent=35 // pred_check
        %p949 = pneg %p122
      $region38: #{cbr_forward.3} parent=35 // pred_check_branch
        %951 = sbr.rel (%p949) target = $region40
      $region39: #{cbr_forward.3} parent=35 // pred_region
        _
      $region40: #{cbr_forward.3} parent=35 // pred_fallthru
        _
    $region36: #{cbr_forward.3} parent=5 // pred_fallthru
      _
    %p952 = scmp.le.s32.totalorder 2, %s10
    // Predicated region
    $region41: #{cbr_forward.3} parent=5 // pred_check
      %p953 = pneg %p952
    $region42: #{cbr_forward.3} parent=5 // pred_check_branch
      %955 = sbr.rel (%p953) target = $region44
    $region43: #{cbr_forward.3} parent=5 // pred_region
      %s956 = ssub.s32 %s10, 2
      // Predicated region
      $region45: #{cbr_forward.3} parent=43 // pred_check
        %p957 = pneg %p128
      $region46: #{cbr_forward.3} parent=43 // pred_check_branch
        %959 = sbr.rel (%p957) target = $region48
      $region47: #{cbr_forward.3} parent=43 // pred_region
        %p960 = scmp.lt.s32.totalorder %s16, 1
        %s961 = scalar_select %p960, %s16, 1
        %s962 = smul.addr %s961, 3
        %s963 = smul.addr %s962, 4
        %s964 = scalar_lea.vmem %s4, %s963
      $region48: #{cbr_forward.3} parent=43 // pred_fallthru
        _
    $region44: #{cbr_forward.3} parent=5 // pred_fallthru
      _
  $region6: #{cbr_forward.3} parent=0 // loop_footer
    %s14 = sadd.s32 1, %s10
  $region7: #{cbr_forward.3} parent=0 // loop_footer_branch
    %9 = sbr.rel target = $region3
  $region8: #{cbr_forward.3} parent=0 // loop_exit
    _

</llo_original>
